<compile_context>
chip_gen: v5e
topology: v5e:2x2
jax: 0.10.0
libtpu: 0.0.40
codegen_flags: <defaults>
</compile_context>

<pallas_src>
import functools
import math

import jax
import jax.numpy as jnp
from jax.experimental import pallas as pl
from jax.experimental.pallas import tpu as pltpu

# ----- static config (mirrors the torch module's __init__) -------------------
NUM_CLIENTS = 4                                     # args.num_clients
EMB_SIZE = 8                                        # embedding_size
FEATURE_VOCAB = {"ad_id": 16, "city": 10, "device": 6, "user_id": 32}
FEATURE_NAMES = sorted(FEATURE_VOCAB.keys())
INPUT_SIZE = len(FEATURE_VOCAB) * EMB_SIZE          # args.input_size = 32
MLP_DIMS = [INPUT_SIZE, 128, 64, 32, NUM_CLIENTS]   # per-head torch dims
FUSED_DIMS = [INPUT_SIZE, 256, 128, 64, 2 * NUM_CLIENTS]


def _round_up(x, m):
    return (x + m - 1) // m * m


def _cdiv(a, b):
    return (a + b - 1) // b


def _act_dtype():
    # bf16 bias/ReLU only on chips with a bf16 VALU (v6e / v7x); keep f32 on
    # older generations (no bf16 VPU -> bf16 elementwise would unpack/repack).
    try:
        kind = jax.devices()[0].device_kind.lower()
    except Exception:
        return jnp.float32
    return jnp.bfloat16 if any(t in kind for t in ("v6", "v7", "7x")) else jnp.float32


# ----- Pallas kernel ----------------------------------------------------------
def baes_dnn_kernel(feat_ref, tgt_ref,
                    w1_ref, b1_ref, w2_ref, b2_ref,
                    w3_ref, b3_ref, w4_ref, b4_ref,
                    out_ref, *, act_dtype):
    """One batch tile, batch-on-lanes layout.

    feat_ref : (32, Bt) bf16   transposed input features
    tgt_ref  : (8,  Bt) f32    rows 0:4 = ctr targets^T, rows 4:8 = cvr targets^T
    w*_ref   : transposed fused (block-diagonal) weights, bf16
    b*_ref   : transposed fused biases, f32, shape (out_dim, 1)
    out_ref  : (2,  Bt) f32    row 0 = pred_ctr, row 1 = pred_cvr
    """
    zero = jnp.zeros((), act_dtype)

    def layer(x, w_ref, b_ref):
        # bf16 MXU inputs, f32 accumulation; bias add + ReLU in act_dtype.
        a = jnp.dot(w_ref[...], x, preferred_element_type=jnp.float32) + b_ref[...]
        return jnp.maximum(a.astype(act_dtype), zero).astype(jnp.bfloat16)

    h = layer(feat_ref[...], w1_ref, b1_ref)                   # (256, Bt)
    h = layer(h, w2_ref, b2_ref)                                # (128, Bt)
    h = layer(h, w3_ref, b3_ref)                                # (64,  Bt)
    logits = jnp.dot(w4_ref[...], h,
                     preferred_element_type=jnp.float32) + b4_ref[...]  # (8, Bt)

    C = NUM_CLIENTS

    def gate_dot(lg, tg):
        # per-sample softmax(lg, axis=0) . tg ; lg / tg are (4, Bt) dense vregs.
        m = jnp.max(lg, axis=0, keepdims=True)                  # (1, Bt)
        e = jnp.exp(lg - m)                                     # (4, Bt)
        num = jnp.sum(e * tg, axis=0, keepdims=True)            # (1, Bt)
        den = jnp.sum(e, axis=0, keepdims=True)                 # (1, Bt)
        return num * pl.reciprocal(den, approx=True)            # EUP slot

    pred_ctr = gate_dot(logits[0:C, :], tgt_ref[0:C, :])
    pred_cvr = gate_dot(logits[C:2 * C, :], tgt_ref[C:2 * C, :])
    out_ref[...] = jnp.concatenate([pred_ctr, pred_cvr], axis=0)  # (2, Bt) dense


@functools.partial(jax.jit, static_argnames=("b_tile",))
def baes_dnn_forward(feat_t, fused_params_t, ctr, cvr, b_tile=2048):
    """feat_t: bf16 (32, B); fused_params_t: transposed fused heads; ctr/cvr: f32 (B, C)."""
    C = NUM_CLIENTS
    in_dim, B = feat_t.shape
    assert in_dim == INPUT_SIZE

    # Tile choice: multiple of 128 (lane-dense blocks / output); keep >= 2 grid
    # steps when the batch allows it so the "parallel" axis feeds both v7x TCs.
    bt = max(128, _round_up(b_tile, 128))
    if B > 128:
        bt = min(bt, max(128, _round_up(_cdiv(B, 2), 128)))
    bt = min(bt, _round_up(B, 128))
    n_tiles = _cdiv(B, bt)

    # Targets in the same batch-on-lanes layout (tiny relayout: 32 B/row).
    tgt_t = jnp.concatenate([ctr.T, cvr.T], axis=0)             # (2C, B) f32

    w1, b1, w2, b2, w3, b3, w4, b4 = fused_params_t

    def col_spec(rows):
        return pl.BlockSpec((rows, bt), lambda i: (0, i))

    def const_spec(shape):                                      # resident across grid
        return pl.BlockSpec(shape, lambda i: (0, 0))

    in_specs = [
        col_spec(INPUT_SIZE),                                   # feat_t
        col_spec(2 * C),                                        # tgt_t
        const_spec(w1.shape), const_spec(b1.shape),
        const_spec(w2.shape), const_spec(b2.shape),
        const_spec(w3.shape), const_spec(b3.shape),
        const_spec(w4.shape), const_spec(b4.shape),
    ]
    out_spec = col_spec(2)

    param_bytes = sum(int(p.size) * p.dtype.itemsize for p in fused_params_t)
    flops_per_row = 2 * sum(FUSED_DIMS[i] * FUSED_DIMS[i + 1] for i in range(4))
    cost = pl.CostEstimate(
        flops=B * flops_per_row,
        transcendentals=B * (2 * C + 2),                         # exps + reciprocals
        bytes_accessed=B * (INPUT_SIZE * 2 + 2 * C * 4 + 2 * 4) + param_bytes,
    )

    pred = pl.pallas_call(
        functools.partial(baes_dnn_kernel, act_dtype=_act_dtype()),
        out_shape=jax.ShapeDtypeStruct((2, B), jnp.float32),
        grid_spec=pltpu.PrefetchScalarGridSpec(
            num_scalar_prefetch=0,
            grid=(n_tiles,),
            in_specs=in_specs,
            out_specs=out_spec,
        ),
        compiler_params=pltpu.CompilerParams(
            dimension_semantics=("parallel",),                   # megacore on v7x
            vmem_limit_bytes=48 * 1024 * 1024,                   # <= v7x physical
        ),
        cost_estimate=cost,
    )(feat_t, tgt_t, w1, b1, w2, b2, w3, b3, w4, b4)

    # torch.squeeze -> shape [B] each
    return pred[0], pred[1]


# ----- one-time wrapper-side packing of the two heads (transposed layout) -----
def _block_diag(a, b):
    z_tr = jnp.zeros((a.shape[0], b.shape[1]), a.dtype)
    z_bl = jnp.zeros((b.shape[0], a.shape[1]), b.dtype)
    return jnp.concatenate(
        [jnp.concatenate([a, z_tr], axis=1),
         jnp.concatenate([z_bl, b], axis=1)], axis=0)


def pack_fused_params_t(ctr_params, cvr_params):
    """Fuse the two 4-layer heads into one block-diagonal chain, transposed so
    the kernel runs with the batch on the lane axis (exact: ReLU is elementwise,
    off-diagonal zero blocks contribute exactly zero)."""
    cw1, cb1, cw2, cb2, cw3, cb3, cw4, cb4 = ctr_params
    vw1, vb1, vw2, vb2, vw3, vb3, vw4, vb4 = cvr_params
    w1t = jnp.concatenate([cw1.T, vw1.T], axis=0).astype(jnp.bfloat16)   # (256, 32)
    w2t = _block_diag(cw2.T, vw2.T).astype(jnp.bfloat16)                 # (128, 256)
    w3t = _block_diag(cw3.T, vw3.T).astype(jnp.bfloat16)                 # (64, 128)
    w4t = _block_diag(cw4.T, vw4.T).astype(jnp.bfloat16)                 # (8, 64)
    b1t = jnp.concatenate([cb1, vb1], axis=1).T                          # f32 (256, 1)
    b2t = jnp.concatenate([cb2, vb2], axis=1).T                          # f32 (128, 1)
    b3t = jnp.concatenate([cb3, vb3], axis=1).T                          # f32 (64, 1)
    b4t = jnp.concatenate([cb4, vb4], axis=1).T                          # f32 (8, 1)
    return (w1t, b1t, w2t, b2t, w3t, b3t, w4t, b4t)


# ----- deterministic parameter construction (synthetic, not a checkpoint) -----
def init_embeddings(key):
    tables = {}
    for name in FEATURE_NAMES:
        key, sub = jax.random.split(key)
        tables[name] = 0.01 * jax.random.normal(
            sub, (FEATURE_VOCAB[name], EMB_SIZE), jnp.float32)
    return tables, key


def init_mlp(key):
    params = []
    for i in range(4):
        key, kw, kb = jax.random.split(key, 3)
        fan_in = MLP_DIMS[i]
        bound = 1.0 / math.sqrt(fan_in)
        w = jax.random.uniform(kw, (MLP_DIMS[i], MLP_DIMS[i + 1]),
                               jnp.float32, -bound, bound)
        b = jax.random.uniform(kb, (1, MLP_DIMS[i + 1]),
                               jnp.float32, -bound, bound)
        params += [w, b]
    return tuple(params), key


# ----- plain-JAX glue: embedding gather + concat ------------------------------
def embed_and_concat(tables, x_dict):
    # reference layout: torch.cat([emb(x[name]) for name], dim=1) -> f32 (B, 32)
    parts = [jnp.take(tables[name], x_dict[name], axis=0) for name in FEATURE_NAMES]
    return jnp.concatenate(parts, axis=1)


def embed_and_concat_t(tables, x_dict):
    # kernel layout: gather straight into (feature, batch) bf16, so no separate
    # full-batch pad / cast / transpose pass is needed before the kernel.
    parts = [jnp.take(tables[name].astype(jnp.bfloat16).T, x_dict[name], axis=1)
             for name in FEATURE_NAMES]                       # each (EMB_SIZE, B)
    return jnp.concatenate(parts, axis=0)                     # bf16 (32, B)


# ----- pure-JAX f32 reference (torch-faithful, un-fused) ----------------------
def _mlp_softmax(feat, w1, b1, w2, b2, w3, b3, w4, b4):
    h = jnp.maximum(jnp.dot(feat, w1) + b1, 0.0)
    h = jnp.maximum(jnp.dot(h, w2) + b2, 0.0)
    h = jnp.maximum(jnp.dot(h, w3) + b3, 0.0)
    logits = jnp.dot(h, w4) + b4
    m = jnp.max(logits, axis=-1, keepdims=True)
    e = jnp.exp(logits - m)
    return e / jnp.sum(e, axis=-1, keepdims=True)


def reference_forward(feat, ctr_params, cvr_params, ctr, cvr):
    g_ctr = _mlp_softmax(feat, *ctr_params)
    g_cvr = _mlp_softmax(feat, *cvr_params)
    return (jnp.sum(g_ctr * ctr, axis=-1), jnp.sum(g_cvr * cvr, axis=-1))


if __name__ == "__main__":
    key = jax.random.PRNGKey(0)
    B = 300          # not a multiple of the tile -> exercises multi-step grid + ragged tail
    B_TILE = 128

    tables, key = init_embeddings(key)
    ctr_params, key = init_mlp(key)
    cvr_params, key = init_mlp(key)
    fused_t = pack_fused_params_t(ctr_params, cvr_params)

    # x is a dict of int id tensors, one per feature (as in the torch module)
    x_dict = {}
    for name in FEATURE_NAMES:
        key, sub = jax.random.split(key)
        x_dict[name] = jax.random.randint(sub, (B,), 0, FEATURE_VOCAB[name])

    key, k_ctr, k_cvr = jax.random.split(key, 3)
    ctr = jax.random.uniform(k_ctr, (B, NUM_CLIENTS), jnp.float32)
    cvr = jax.random.uniform(k_cvr, (B, NUM_CLIENTS), jnp.float32)

    feat_t = embed_and_concat_t(tables, x_dict)      # bf16 (32, B)

    pred_ctr, pred_cvr = baes_dnn_forward(feat_t, fused_t, ctr, cvr, b_tile=B_TILE)
    jax.block_until_ready((pred_ctr, pred_cvr))

    feat_f32 = embed_and_concat(tables, x_dict)      # f32 (B, 32) for the reference
    ref_ctr, ref_cvr = reference_forward(feat_f32, ctr_params, cvr_params, ctr, cvr)

    assert pred_ctr.shape == (B,) and pred_cvr.shape == (B,)
    # bf16 weights/activations + EUP approx reciprocal -> bf16-level tolerance.
    assert jnp.allclose(pred_ctr, ref_ctr, atol=2e-2, rtol=2e-2)
    assert jnp.allclose(pred_cvr, ref_cvr, atol=2e-2, rtol=2e-2)

    print("KERNEL_OK")
</pallas_src>

<mosaic_0001>
module attributes {stable_mosaic.version = 11 : i64} {
  func.func @baes_dnn_kernel(%arg0: i32, %arg1: memref<32x128xbf16, #tpu.memory_space<vmem>>, %arg2: memref<8x128xf32, #tpu.memory_space<vmem>>, %arg3: memref<256x32xbf16, #tpu.memory_space<vmem>>, %arg4: memref<256x1xf32, #tpu.memory_space<vmem>>, %arg5: memref<128x256xbf16, #tpu.memory_space<vmem>>, %arg6: memref<128x1xf32, #tpu.memory_space<vmem>>, %arg7: memref<64x128xbf16, #tpu.memory_space<vmem>>, %arg8: memref<64x1xf32, #tpu.memory_space<vmem>>, %arg9: memref<8x64xbf16, #tpu.memory_space<vmem>>, %arg10: memref<8x1xf32, #tpu.memory_space<vmem>>, %arg11: memref<2x128xf32, #tpu.memory_space<vmem>>) attributes {dimension_semantics = [#tpu.dimension_semantics<parallel>], iteration_bounds = array<i64: 3>, scalar_prefetch = 0 : i64, scratch_operands = 0 : i64, tpu.core_type = #tpu.core_type<tc>, window_params = [{transform_indices = @transform_0, window_bounds = array<i64: 32, 128>}, {transform_indices = @transform_1, window_bounds = array<i64: 8, 128>}, {pipeline_mode = #tpu.pipeline_mode<synchronous>, transform_indices = @transform_2, window_bounds = array<i64: 256, 32>}, {pipeline_mode = #tpu.pipeline_mode<synchronous>, transform_indices = @transform_3, window_bounds = array<i64: 256, 1>}, {pipeline_mode = #tpu.pipeline_mode<synchronous>, transform_indices = @transform_4, window_bounds = array<i64: 128, 256>}, {pipeline_mode = #tpu.pipeline_mode<synchronous>, transform_indices = @transform_5, window_bounds = array<i64: 128, 1>}, {pipeline_mode = #tpu.pipeline_mode<synchronous>, transform_indices = @transform_6, window_bounds = array<i64: 64, 128>}, {pipeline_mode = #tpu.pipeline_mode<synchronous>, transform_indices = @transform_7, window_bounds = array<i64: 64, 1>}, {pipeline_mode = #tpu.pipeline_mode<synchronous>, transform_indices = @transform_8, window_bounds = array<i64: 8, 64>}, {pipeline_mode = #tpu.pipeline_mode<synchronous>, transform_indices = @transform_9, window_bounds = array<i64: 8, 1>}, {transform_indices = @transform_10, window_bounds = array<i64: 2, 128>}]} {
    %c0 = arith.constant 0 : index
    %c0_0 = arith.constant 0 : index
    %0 = vector.load %arg1[%c0, %c0_0] : memref<32x128xbf16, #tpu.memory_space<vmem>>, vector<32x128xbf16>
    %c0_1 = arith.constant 0 : index
    %c0_2 = arith.constant 0 : index
    %1 = vector.load %arg3[%c0_1, %c0_2] : memref<256x32xbf16, #tpu.memory_space<vmem>>, vector<256x32xbf16>
    %cst = arith.constant dense<0.000000e+00> : vector<256x128xf32>
    %2 = tpu.matmul %1, %0, %cst {dimension_numbers = #tpu.dot_dimension_numbers<[1], [0], [0], [1], [0, 0, 1, 1], [], []>} : vector<256x32xbf16>, vector<32x128xbf16>, vector<256x128xf32> -> vector<256x128xf32>
    %c0_3 = arith.constant 0 : index
    %c0_4 = arith.constant 0 : index
    %3 = vector.load %arg4[%c0_3, %c0_4] : memref<256x1xf32, #tpu.memory_space<vmem>>, vector<256x1xf32>
    %4 = vector.broadcast %3 : vector<256x1xf32> to vector<256x128xf32>
    %5 = arith.addf %2, %4 : vector<256x128xf32>
    %cst_5 = arith.constant 0.000000e+00 : f32
    %6 = vector.broadcast %cst_5 : f32 to vector<256x128xf32>
    %7 = arith.maximumf %5, %6 : vector<256x128xf32>
    %8 = arith.truncf %7 : vector<256x128xf32> to vector<256x128xbf16>
    %c0_6 = arith.constant 0 : index
    %c0_7 = arith.constant 0 : index
    %9 = vector.load %arg5[%c0_6, %c0_7] : memref<128x256xbf16, #tpu.memory_space<vmem>>, vector<128x256xbf16>
    %cst_8 = arith.constant dense<0.000000e+00> : vector<128x128xf32>
    %10 = tpu.matmul %9, %8, %cst_8 {dimension_numbers = #tpu.dot_dimension_numbers<[1], [0], [0], [1], [0, 0, 1, 1], [], []>} : vector<128x256xbf16>, vector<256x128xbf16>, vector<128x128xf32> -> vector<128x128xf32>
    %c0_9 = arith.constant 0 : index
    %c0_10 = arith.constant 0 : index
    %11 = vector.load %arg6[%c0_9, %c0_10] : memref<128x1xf32, #tpu.memory_space<vmem>>, vector<128x1xf32>
    %12 = vector.broadcast %11 : vector<128x1xf32> to vector<128x128xf32>
    %13 = arith.addf %10, %12 : vector<128x128xf32>
    %cst_11 = arith.constant 0.000000e+00 : f32
    %14 = vector.broadcast %cst_11 : f32 to vector<128x128xf32>
    %15 = arith.maximumf %13, %14 : vector<128x128xf32>
    %16 = arith.truncf %15 : vector<128x128xf32> to vector<128x128xbf16>
    %c0_12 = arith.constant 0 : index
    %c0_13 = arith.constant 0 : index
    %17 = vector.load %arg7[%c0_12, %c0_13] : memref<64x128xbf16, #tpu.memory_space<vmem>>, vector<64x128xbf16>
    %cst_14 = arith.constant dense<0.000000e+00> : vector<64x128xf32>
    %18 = tpu.matmul %17, %16, %cst_14 {dimension_numbers = #tpu.dot_dimension_numbers<[1], [0], [0], [1], [0, 0, 1, 1], [], []>} : vector<64x128xbf16>, vector<128x128xbf16>, vector<64x128xf32> -> vector<64x128xf32>
    %c0_15 = arith.constant 0 : index
    %c0_16 = arith.constant 0 : index
    %19 = vector.load %arg8[%c0_15, %c0_16] : memref<64x1xf32, #tpu.memory_space<vmem>>, vector<64x1xf32>
    %20 = vector.broadcast %19 : vector<64x1xf32> to vector<64x128xf32>
    %21 = arith.addf %18, %20 : vector<64x128xf32>
    %cst_17 = arith.constant 0.000000e+00 : f32
    %22 = vector.broadcast %cst_17 : f32 to vector<64x128xf32>
    %23 = arith.maximumf %21, %22 : vector<64x128xf32>
    %24 = arith.truncf %23 : vector<64x128xf32> to vector<64x128xbf16>
    %c0_18 = arith.constant 0 : index
    %c0_19 = arith.constant 0 : index
    %25 = vector.load %arg9[%c0_18, %c0_19] : memref<8x64xbf16, #tpu.memory_space<vmem>>, vector<8x64xbf16>
    %cst_20 = arith.constant dense<0.000000e+00> : vector<8x128xf32>
    %26 = tpu.matmul %25, %24, %cst_20 {dimension_numbers = #tpu.dot_dimension_numbers<[1], [0], [0], [1], [0, 0, 1, 1], [], []>} : vector<8x64xbf16>, vector<64x128xbf16>, vector<8x128xf32> -> vector<8x128xf32>
    %c0_21 = arith.constant 0 : index
    %c0_22 = arith.constant 0 : index
    %27 = vector.load %arg10[%c0_21, %c0_22] : memref<8x1xf32, #tpu.memory_space<vmem>>, vector<8x1xf32>
    %28 = vector.broadcast %27 : vector<8x1xf32> to vector<8x128xf32>
    %29 = arith.addf %26, %28 : vector<8x128xf32>
    %30 = vector.extract_strided_slice %29 {offsets = [0, 0], sizes = [4, 128], strides = [1, 1]} : vector<8x128xf32> to vector<4x128xf32>
    %c0_23 = arith.constant 0 : index
    %c0_24 = arith.constant 0 : index
    %31 = vector.load %arg2[%c0_23, %c0_24] : memref<8x128xf32, #tpu.memory_space<vmem>>, vector<4x128xf32>
    %cst_25 = arith.constant dense<0xFF800000> : vector<128xf32>
    %32 = vector.multi_reduction <maximumf>, %30, %cst_25 [0] : vector<4x128xf32> to vector<128xf32>
    %33 = vector.shape_cast %32 : vector<128xf32> to vector<1x128xf32>
    %34 = vector.broadcast %33 : vector<1x128xf32> to vector<4x128xf32>
    %35 = arith.subf %30, %34 : vector<4x128xf32>
    %36 = math.exp %35 : vector<4x128xf32>
    %37 = arith.mulf %36, %31 : vector<4x128xf32>
    %cst_26 = arith.constant dense<0.000000e+00> : vector<128xf32>
    %38 = vector.multi_reduction <add>, %37, %cst_26 [0] : vector<4x128xf32> to vector<128xf32>
    %39 = vector.shape_cast %38 : vector<128xf32> to vector<1x128xf32>
    %cst_27 = arith.constant dense<0.000000e+00> : vector<128xf32>
    %40 = vector.multi_reduction <add>, %36, %cst_27 [0] : vector<4x128xf32> to vector<128xf32>
    %41 = vector.shape_cast %40 : vector<128xf32> to vector<1x128xf32>
    %42 = tpu.reciprocal %41 {approx = true} : vector<1x128xf32> -> vector<1x128xf32>
    %43 = arith.mulf %39, %42 : vector<1x128xf32>
    %44 = vector.extract_strided_slice %29 {offsets = [4, 0], sizes = [4, 128], strides = [1, 1]} : vector<8x128xf32> to vector<4x128xf32>
    %c4 = arith.constant 4 : index
    %c0_28 = arith.constant 0 : index
    %45 = vector.load %arg2[%c4, %c0_28] : memref<8x128xf32, #tpu.memory_space<vmem>>, vector<4x128xf32>
    %cst_29 = arith.constant dense<0xFF800000> : vector<128xf32>
    %46 = vector.multi_reduction <maximumf>, %44, %cst_29 [0] : vector<4x128xf32> to vector<128xf32>
    %47 = vector.shape_cast %46 : vector<128xf32> to vector<1x128xf32>
    %48 = vector.broadcast %47 : vector<1x128xf32> to vector<4x128xf32>
    %49 = arith.subf %44, %48 : vector<4x128xf32>
    %50 = math.exp %49 : vector<4x128xf32>
    %51 = arith.mulf %50, %45 : vector<4x128xf32>
    %cst_30 = arith.constant dense<0.000000e+00> : vector<128xf32>
    %52 = vector.multi_reduction <add>, %51, %cst_30 [0] : vector<4x128xf32> to vector<128xf32>
    %53 = vector.shape_cast %52 : vector<128xf32> to vector<1x128xf32>
    %cst_31 = arith.constant dense<0.000000e+00> : vector<128xf32>
    %54 = vector.multi_reduction <add>, %50, %cst_31 [0] : vector<4x128xf32> to vector<128xf32>
    %55 = vector.shape_cast %54 : vector<128xf32> to vector<1x128xf32>
    %56 = tpu.reciprocal %55 {approx = true} : vector<1x128xf32> -> vector<1x128xf32>
    %57 = arith.mulf %53, %56 : vector<1x128xf32>
    %58 = tpu.concatenate %43, %57 in 0 : vector<1x128xf32>, vector<1x128xf32> -> vector<2x128xf32>
    %c0_32 = arith.constant 0 : index
    %c0_33 = arith.constant 0 : index
    %59 = vector.load %arg11[%c0_32, %c0_33] : memref<2x128xf32, #tpu.memory_space<vmem>>, vector<2x128xf32>
    tpu.vector_store %arg11[%c0_32, %c0_33], %58 {strides = array<i32>} : memref<2x128xf32, #tpu.memory_space<vmem>>, vector<2x128xf32>,
    return
  }
  func.func @transform_0(%arg0: i32) -> (i32, i32) {
    %c0_i32 = arith.constant 0 : i32
    %c0_i32_0 = arith.constant 0 : i32
    return %c0_i32, %arg0 : i32, i32
  }
  func.func @transform_1(%arg0: i32) -> (i32, i32) {
    %c0_i32 = arith.constant 0 : i32
    %c0_i32_0 = arith.constant 0 : i32
    return %c0_i32, %arg0 : i32, i32
  }
  func.func @transform_2(%arg0: i32) -> (i32, i32) {
    %c0_i32 = arith.constant 0 : i32
    %c0_i32_0 = arith.constant 0 : i32
    %c0_i32_1 = arith.constant 0 : i32
    return %c0_i32, %c0_i32_0 : i32, i32
  }
  func.func @transform_3(%arg0: i32) -> (i32, i32) {
    %c0_i32 = arith.constant 0 : i32
    %c0_i32_0 = arith.constant 0 : i32
    %c0_i32_1 = arith.constant 0 : i32
    return %c0_i32, %c0_i32_0 : i32, i32
  }
  func.func @transform_4(%arg0: i32) -> (i32, i32) {
    %c0_i32 = arith.constant 0 : i32
    %c0_i32_0 = arith.constant 0 : i32
    %c0_i32_1 = arith.constant 0 : i32
    return %c0_i32, %c0_i32_0 : i32, i32
  }
  func.func @transform_5(%arg0: i32) -> (i32, i32) {
    %c0_i32 = arith.constant 0 : i32
    %c0_i32_0 = arith.constant 0 : i32
    %c0_i32_1 = arith.constant 0 : i32
    return %c0_i32, %c0_i32_0 : i32, i32
  }
  func.func @transform_6(%arg0: i32) -> (i32, i32) {
    %c0_i32 = arith.constant 0 : i32
    %c0_i32_0 = arith.constant 0 : i32
    %c0_i32_1 = arith.constant 0 : i32
    return %c0_i32, %c0_i32_0 : i32, i32
  }
  func.func @transform_7(%arg0: i32) -> (i32, i32) {
    %c0_i32 = arith.constant 0 : i32
    %c0_i32_0 = arith.constant 0 : i32
    %c0_i32_1 = arith.constant 0 : i32
    return %c0_i32, %c0_i32_0 : i32, i32
  }
  func.func @transform_8(%arg0: i32) -> (i32, i32) {
    %c0_i32 = arith.constant 0 : i32
    %c0_i32_0 = arith.constant 0 : i32
    %c0_i32_1 = arith.constant 0 : i32
    return %c0_i32, %c0_i32_0 : i32, i32
  }
  func.func @transform_9(%arg0: i32) -> (i32, i32) {
    %c0_i32 = arith.constant 0 : i32
    %c0_i32_0 = arith.constant 0 : i32
    %c0_i32_1 = arith.constant 0 : i32
    return %c0_i32, %c0_i32_0 : i32, i32
  }
  func.func @transform_10(%arg0: i32) -> (i32, i32) {
    %c0_i32 = arith.constant 0 : i32
    %c0_i32_0 = arith.constant 0 : i32
    return %c0_i32, %arg0 : i32, i32
  }
}

</mosaic_0001>

<llo_original>
// kernel: baes_dnn_forward.1
$region0: #{baes_dnn_forward.1}
  #allocation0 [shape = 'u32[]', space=smem, size = 0x4, offset = 0x4, fixed_abs, tag = 'smem constant byte address 0x4 - core index']
  #allocation1 [shape = 'u32[72,128]{1,0:T(1,128)}', space=vmem, size = 0x9000, scoped, tag = 'internal scratch']
  %s0 = inlined_call_operand.vmem [shape: bf16[32,300], index: 0, kind: input, shape index: {}]
  %s1 = inlined_call_operand.vmem [shape: f32[8,300], index: 1, kind: input, shape index: {}]
  %s2 = inlined_call_operand.vmem [shape: bf16[256,32], index: 2, kind: input, shape index: {}]
  %s3 = inlined_call_operand.vmem [shape: f32[256,1], index: 3, kind: input, shape index: {}]
  %s4 = inlined_call_operand.vmem [shape: bf16[128,256], index: 4, kind: input, shape index: {}]
  %s5 = inlined_call_operand.vmem [shape: f32[128,1], index: 5, kind: input, shape index: {}]
  %s6 = inlined_call_operand.vmem [shape: bf16[64,128], index: 6, kind: input, shape index: {}]
  %s7 = inlined_call_operand.vmem [shape: f32[64,1], index: 7, kind: input, shape index: {}]
  %s8 = inlined_call_operand.vmem [shape: bf16[8,64], index: 8, kind: input, shape index: {}]
  %s9 = inlined_call_operand.vmem [shape: f32[8,1], index: 9, kind: input, shape index: {}]
  %s10 = inlined_call_operand.vmem [shape: f32[2,300], index: 10, kind: output, shape index: {}]
  %s11 = sld [smem:[#allocation0]]
  $region114: #{baes_dnn_forward.1} parent=0
    _
  %s13 = ssub.s32 1, %s11
  %s14 = scalar_select 0, %s13, %s11
  $region1: #{baes_dnn_forward.1} parent=0
    #allocation2 [shape = 'u8[16384]{0}', space=vmem, size = 0x4000, scoped, tag = 'input window, operand 0']
    loop: start=0, step=1, limit=5
    $region2: #{baes_dnn_forward.1} parent=1 // loop_pre_header
      _
    $region3: #{baes_dnn_forward.1} parent=1 // loop_header
      %s16 = sphi 0, %s20
      %p17 = scmp.ge.s32.totalorder %s16, 5
      %s26 = sphi 0, %s28
      %s29 = sphi 0, %s26
      %s30 = sphi 0, %s29
      %s46 = sphi 0, %s30
      %s52 = sphi 0, %s54
      %s55 = sphi 0, %s52
      %s56 = sphi 0, %s55
      %s72 = sphi 0, %s56
      %s76 = sphi 0, %s76
      %s78 = sphi 0, %s76
      %s79 = sphi 0, %s78
      %s93 = sphi 0, %s79
      %s97 = sphi 0, %s97
      %s99 = sphi 0, %s97
      %s100 = sphi 0, %s99
      %s114 = sphi 0, %s100
      %s118 = sphi 0, %s118
      %s120 = sphi 0, %s118
      %s121 = sphi 0, %s120
      %s135 = sphi 0, %s121
      %s139 = sphi 0, %s139
      %s141 = sphi 0, %s139
      %s142 = sphi 0, %s141
      %s156 = sphi 0, %s142
      %s160 = sphi 0, %s160
      %s162 = sphi 0, %s160
      %s163 = sphi 0, %s162
      %s177 = sphi 0, %s163
      %s181 = sphi 0, %s181
      %s183 = sphi 0, %s181
      %s184 = sphi 0, %s183
      %s198 = sphi 0, %s184
      %s202 = sphi 0, %s202
      %s204 = sphi 0, %s202
      %s205 = sphi 0, %s204
      %s219 = sphi 0, %s205
      %s223 = sphi 0, %s223
      %s225 = sphi 0, %s223
      %s226 = sphi 0, %s225
      %s240 = sphi 0, %s226
      %s246 = sphi 0, %s248
      %s249 = sphi 0, %s246
      %s250 = sphi 0, %s249
      %s266 = sphi 0, %s250
    $region4: #{baes_dnn_forward.1} parent=1 // loop_header_branch
      %19 = sbr.rel (%p17) target = $region8
    $region5: #{baes_dnn_forward.1} parent=1 // loop_body
      %s21 = ssub.s32 %s16, 1
      %s22 = ssub.s32 %s16, 2
      %s23 = sadd.s32 %s16, 1
      %s24 = ssub.s32 %s16, %s23
      %p25 = scmp.eq.s32.totalorder %s24, 0
      %s27 = sadd.s32 %s26, 1
      %s28 = scalar_select %p25, %s26, %s27
      %p31 = pneg %p25
      %p32 = scmp.eq.s32.totalorder %s16, 2
      %p33 = por %p31, %p32
      %p34 = scmp.ne.s32.totalorder %s26, %s29
      %p35 = scmp.eq.s32.totalorder %s16, 0
      %p36 = por %p34, %p35
      %p37 = scmp.ne.s32.totalorder %s26, %s29
      %p38 = scmp.eq.s32.totalorder %s21, 2
      %p39 = por %p37, %p38
      %p40 = scmp.ne.s32.totalorder %s29, %s30
      %p41 = scmp.eq.s32.totalorder %s21, 0
      %p42 = por %p40, %p41
      %p43 = scmp.ne.s32.totalorder %s29, %s30
      %p44 = scmp.eq.s32.totalorder %s22, 2
      %p45 = por %p43, %p44
      %p47 = scmp.ne.s32.totalorder %s30, %s46
      %p48 = scmp.eq.s32.totalorder %s22, 0
      %p49 = por %p47, %p48
      %s50 = ssub.s32 %s16, %s23
      %p51 = scmp.eq.s32.totalorder %s50, 0
      %s53 = sadd.s32 %s52, 1
      %s54 = scalar_select %p51, %s52, %s53
      %p57 = pneg %p51
      %p58 = scmp.eq.s32.totalorder %s16, 2
      %p59 = por %p57, %p58
      %p60 = scmp.ne.s32.totalorder %s52, %s55
      %p61 = scmp.eq.s32.totalorder %s16, 0
      %p62 = por %p60, %p61
      %p63 = scmp.ne.s32.totalorder %s52, %s55
      %p64 = scmp.eq.s32.totalorder %s21, 2
      %p65 = por %p63, %p64
      %p66 = scmp.ne.s32.totalorder %s55, %s56
      %p67 = scmp.eq.s32.totalorder %s21, 0
      %p68 = por %p66, %p67
      %p69 = scmp.ne.s32.totalorder %s55, %s56
      %p70 = scmp.eq.s32.totalorder %s22, 2
      %p71 = por %p69, %p70
      %p73 = scmp.ne.s32.totalorder %s56, %s72
      %p74 = scmp.eq.s32.totalorder %s22, 0
      %p75 = por %p73, %p74
      %s77 = sadd.s32 %s76, 1
      %p80 = scmp.eq.s32.totalorder %s16, 2
      %p81 = scmp.ne.s32.totalorder %s76, %s78
      %p82 = scmp.eq.s32.totalorder %s16, 0
      %p83 = por %p81, %p82
      %p84 = scmp.ne.s32.totalorder %s76, %s78
      %p85 = scmp.eq.s32.totalorder %s21, 2
      %p86 = por %p84, %p85
      %p87 = scmp.ne.s32.totalorder %s78, %s79
      %p88 = scmp.eq.s32.totalorder %s21, 0
      %p89 = por %p87, %p88
      %p90 = scmp.ne.s32.totalorder %s78, %s79
      %p91 = scmp.eq.s32.totalorder %s22, 2
      %p92 = por %p90, %p91
      %p94 = scmp.ne.s32.totalorder %s79, %s93
      %p95 = scmp.eq.s32.totalorder %s22, 0
      %p96 = por %p94, %p95
      %s98 = sadd.s32 %s97, 1
      %p101 = scmp.eq.s32.totalorder %s16, 2
      %p102 = scmp.ne.s32.totalorder %s97, %s99
      %p103 = scmp.eq.s32.totalorder %s16, 0
      %p104 = por %p102, %p103
      %p105 = scmp.ne.s32.totalorder %s97, %s99
      %p106 = scmp.eq.s32.totalorder %s21, 2
      %p107 = por %p105, %p106
      %p108 = scmp.ne.s32.totalorder %s99, %s100
      %p109 = scmp.eq.s32.totalorder %s21, 0
      %p110 = por %p108, %p109
      %p111 = scmp.ne.s32.totalorder %s99, %s100
      %p112 = scmp.eq.s32.totalorder %s22, 2
      %p113 = por %p111, %p112
      %p115 = scmp.ne.s32.totalorder %s100, %s114
      %p116 = scmp.eq.s32.totalorder %s22, 0
      %p117 = por %p115, %p116
      %s119 = sadd.s32 %s118, 1
      %p122 = scmp.eq.s32.totalorder %s16, 2
      %p123 = scmp.ne.s32.totalorder %s118, %s120
      %p124 = scmp.eq.s32.totalorder %s16, 0
      %p125 = por %p123, %p124
      %p126 = scmp.ne.s32.totalorder %s118, %s120
      %p127 = scmp.eq.s32.totalorder %s21, 2
      %p128 = por %p126, %p127
      %p129 = scmp.ne.s32.totalorder %s120, %s121
      %p130 = scmp.eq.s32.totalorder %s21, 0
      %p131 = por %p129, %p130
      %p132 = scmp.ne.s32.totalorder %s120, %s121
      %p133 = scmp.eq.s32.totalorder %s22, 2
      %p134 = por %p132, %p133
      %p136 = scmp.ne.s32.totalorder %s121, %s135
      %p137 = scmp.eq.s32.totalorder %s22, 0
      %p138 = por %p136, %p137
      %s140 = sadd.s32 %s139, 1
      %p143 = scmp.eq.s32.totalorder %s16, 2
      %p144 = scmp.ne.s32.totalorder %s139, %s141
      %p145 = scmp.eq.s32.totalorder %s16, 0
      %p146 = por %p144, %p145
      %p147 = scmp.ne.s32.totalorder %s139, %s141
      %p148 = scmp.eq.s32.totalorder %s21, 2
      %p149 = por %p147, %p148
      %p150 = scmp.ne.s32.totalorder %s141, %s142
      %p151 = scmp.eq.s32.totalorder %s21, 0
      %p152 = por %p150, %p151
      %p153 = scmp.ne.s32.totalorder %s141, %s142
      %p154 = scmp.eq.s32.totalorder %s22, 2
      %p155 = por %p153, %p154
      %p157 = scmp.ne.s32.totalorder %s142, %s156
      %p158 = scmp.eq.s32.totalorder %s22, 0
      %p159 = por %p157, %p158
      %s161 = sadd.s32 %s160, 1
      %p164 = scmp.eq.s32.totalorder %s16, 2
      %p165 = scmp.ne.s32.totalorder %s160, %s162
      %p166 = scmp.eq.s32.totalorder %s16, 0
      %p167 = por %p165, %p166
      %p168 = scmp.ne.s32.totalorder %s160, %s162
      %p169 = scmp.eq.s32.totalorder %s21, 2
      %p170 = por %p168, %p169
      %p171 = scmp.ne.s32.totalorder %s162, %s163
      %p172 = scmp.eq.s32.totalorder %s21, 0
      %p173 = por %p171, %p172
      %p174 = scmp.ne.s32.totalorder %s162, %s163
      %p175 = scmp.eq.s32.totalorder %s22, 2
      %p176 = por %p174, %p175
      %p178 = scmp.ne.s32.totalorder %s163, %s177
      %p179 = scmp.eq.s32.totalorder %s22, 0
      %p180 = por %p178, %p179
      %s182 = sadd.s32 %s181, 1
      %p185 = scmp.eq.s32.totalorder %s16, 2
      %p186 = scmp.ne.s32.totalorder %s181, %s183
      %p187 = scmp.eq.s32.totalorder %s16, 0
      %p188 = por %p186, %p187
      %p189 = scmp.ne.s32.totalorder %s181, %s183
      %p190 = scmp.eq.s32.totalorder %s21, 2
      %p191 = por %p189, %p190
      %p192 = scmp.ne.s32.totalorder %s183, %s184
      %p193 = scmp.eq.s32.totalorder %s21, 0
      %p194 = por %p192, %p193
      %p195 = scmp.ne.s32.totalorder %s183, %s184
      %p196 = scmp.eq.s32.totalorder %s22, 2
      %p197 = por %p195, %p196
      %p199 = scmp.ne.s32.totalorder %s184, %s198
      %p200 = scmp.eq.s32.totalorder %s22, 0
      %p201 = por %p199, %p200
      %s203 = sadd.s32 %s202, 1
      %p206 = scmp.eq.s32.totalorder %s16, 2
      %p207 = scmp.ne.s32.totalorder %s202, %s204
      %p208 = scmp.eq.s32.totalorder %s16, 0
      %p209 = por %p207, %p208
      %p210 = scmp.ne.s32.totalorder %s202, %s204
      %p211 = scmp.eq.s32.totalorder %s21, 2
      %p212 = por %p210, %p211
      %p213 = scmp.ne.s32.totalorder %s204, %s205
      %p214 = scmp.eq.s32.totalorder %s21, 0
      %p215 = por %p213, %p214
      %p216 = scmp.ne.s32.totalorder %s204, %s205
      %p217 = scmp.eq.s32.totalorder %s22, 2
      %p218 = por %p216, %p217
      %p220 = scmp.ne.s32.totalorder %s205, %s219
      %p221 = scmp.eq.s32.totalorder %s22, 0
      %p222 = por %p220, %p221
      %s224 = sadd.s32 %s223, 1
      %p227 = scmp.eq.s32.totalorder %s16, 2
      %p228 = scmp.ne.s32.totalorder %s223, %s225
      %p229 = scmp.eq.s32.totalorder %s16, 0
      %p230 = por %p228, %p229
      %p231 = scmp.ne.s32.totalorder %s223, %s225
      %p232 = scmp.eq.s32.totalorder %s21, 2
      %p233 = por %p231, %p232
      %p234 = scmp.ne.s32.totalorder %s225, %s226
      %p235 = scmp.eq.s32.totalorder %s21, 0
      %p236 = por %p234, %p235
      %p237 = scmp.ne.s32.totalorder %s225, %s226
      %p238 = scmp.eq.s32.totalorder %s22, 2
      %p239 = por %p237, %p238
      %p241 = scmp.ne.s32.totalorder %s226, %s240
      %p242 = scmp.eq.s32.totalorder %s22, 0
      %p243 = por %p241, %p242
      %s244 = ssub.s32 %s16, %s23
      %p245 = scmp.eq.s32.totalorder %s244, 0
      %s247 = sadd.s32 %s246, 1
      %s248 = scalar_select %p245, %s246, %s247
      %p251 = pneg %p245
      %p252 = scmp.eq.s32.totalorder %s16, 2
      %p253 = por %p251, %p252
      %p254 = scmp.ne.s32.totalorder %s246, %s249
      %p255 = scmp.eq.s32.totalorder %s16, 0
      %p256 = por %p254, %p255
      %p257 = scmp.ne.s32.totalorder %s246, %s249
      %p258 = scmp.eq.s32.totalorder %s21, 2
      %p259 = por %p257, %p258
      %p260 = scmp.ne.s32.totalorder %s249, %s250
      %p261 = scmp.eq.s32.totalorder %s21, 0
      %p262 = por %p260, %p261
      %p263 = scmp.ne.s32.totalorder %s249, %s250
      %p264 = scmp.eq.s32.totalorder %s22, 2
      %p265 = por %p263, %p264
      %p267 = scmp.ne.s32.totalorder %s250, %s266
      %p268 = scmp.eq.s32.totalorder %s22, 0
      %p269 = por %p267, %p268
      %p270 = scmp.le.s32.totalorder 1, %s16
      %p271 = scmp.lt.s32.totalorder %s16, 4
      %p272 = pnand %p270, %p271
      %p273 = pneg %p272
      // Predicated region
      $region9: #{baes_dnn_forward.1} parent=5 // pred_check
        _
      $region10: #{baes_dnn_forward.1} parent=5 // pred_check_branch
        %275 = sbr.rel (%p272) target = $region12
      $region11: #{baes_dnn_forward.1} parent=5 // pred_region
        %s276 = ssub.s32 %s16, 1
        // Predicated region
        $region13: #{baes_dnn_forward.1} parent=11 // pred_check
          %p277 = pneg %p89
        $region14: #{baes_dnn_forward.1} parent=11 // pred_check_branch
          %279 = sbr.rel (%p277) target = $region16
        $region15: #{baes_dnn_forward.1} parent=11 // pred_region
          _
        $region16: #{baes_dnn_forward.1} parent=11 // pred_fallthru
          _
        // Predicated region
        $region17: #{baes_dnn_forward.1} parent=11 // pred_check
          %p280 = pneg %p110
        $region18: #{baes_dnn_forward.1} parent=11 // pred_check_branch
          %282 = sbr.rel (%p280) target = $region20
        $region19: #{baes_dnn_forward.1} parent=11 // pred_region
          _
        $region20: #{baes_dnn_forward.1} parent=11 // pred_fallthru
          _
        // Predicated region
        $region21: #{baes_dnn_forward.1} parent=11 // pred_check
          %p283 = pneg %p131
        $region22: #{baes_dnn_forward.1} parent=11 // pred_check_branch
          %285 = sbr.rel (%p283) target = $region24
        $region23: #{baes_dnn_forward.1} parent=11 // pred_region
          _
        $region24: #{baes_dnn_forward.1} parent=11 // pred_fallthru
          _
        // Predicated region
        $region25: #{baes_dnn_forward.1} parent=11 // pred_check
          %p286 = pneg %p152
        $region26: #{baes_dnn_forward.1} parent=11 // pred_check_branch
          %288 = sbr.rel (%p286) target = $region28
        $region27: #{baes_dnn_forward.1} parent=11 // pred_region
          _
        $region28: #{baes_dnn_forward.1} parent=11 // pred_fallthru
          _
        // Predicated region
        $region29: #{baes_dnn_forward.1} parent=11 // pred_check
          %p289 = pneg %p173
        $region30: #{baes_dnn_forward.1} parent=11 // pred_check_branch
          %291 = sbr.rel (%p289) target = $region32
        $region31: #{baes_dnn_forward.1} parent=11 // pred_region
          _
        $region32: #{baes_dnn_forward.1} parent=11 // pred_fallthru
          _
        // Predicated region
        $region33: #{baes_dnn_forward.1} parent=11 // pred_check
          %p292 = pneg %p194
        $region34: #{baes_dnn_forward.1} parent=11 // pred_check_branch
          %294 = sbr.rel (%p292) target = $region36
        $region35: #{baes_dnn_forward.1} parent=11 // pred_region
          _
        $region36: #{baes_dnn_forward.1} parent=11 // pred_fallthru
          _
        // Predicated region
        $region37: #{baes_dnn_forward.1} parent=11 // pred_check
          %p295 = pneg %p215
        $region38: #{baes_dnn_forward.1} parent=11 // pred_check_branch
          %297 = sbr.rel (%p295) target = $region40
        $region39: #{baes_dnn_forward.1} parent=11 // pred_region
          _
        $region40: #{baes_dnn_forward.1} parent=11 // pred_fallthru
          _
        // Predicated region
        $region41: #{baes_dnn_forward.1} parent=11 // pred_check
          %p298 = pneg %p236
        $region42: #{baes_dnn_forward.1} parent=11 // pred_check_branch
          %300 = sbr.rel (%p298) target = $region44
        $region43: #{baes_dnn_forward.1} parent=11 // pred_region
          _
        $region44: #{baes_dnn_forward.1} parent=11 // pred_fallthru
          _
      $region12: #{baes_dnn_forward.1} parent=5 // pred_fallthru
        _
      %p301 = scmp.lt.s32.totalorder %s16, 3
      // Predicated region
      $region45: #{baes_dnn_forward.1} parent=5 // pred_check
        %p302 = pneg %p301
      $region46: #{baes_dnn_forward.1} parent=5 // pred_check_branch
        %304 = sbr.rel (%p302) target = $region48
      $region47: #{baes_dnn_forward.1} parent=5 // pred_region
        // Predicated region
        $region49: #{baes_dnn_forward.1} parent=47 // pred_check
          %p305 = pneg %p36
        $region50: #{baes_dnn_forward.1} parent=47 // pred_check_branch
          %307 = sbr.rel (%p305) target = $region52
        $region51: #{baes_dnn_forward.1} parent=47 // pred_region
          %s308 = sand.u32 %s26, 1
          %s309 = sand.u32 %s26, 1
          %s310 = smul.addr %s309, 16
          %s311 = scalar_lea.vmem [#allocation2], %s310
          %s312 = smul.addr %s16, 4
          %s313 = scalar_lea.vmem %s0, %s312
          // Predicated region
          $region53: #{baes_dnn_forward.1} parent=51 // pred_check
            _
          $region54: #{baes_dnn_forward.1} parent=51 // pred_check_branch
            %315 = sbr.rel (0) target = $region56
          $region55: #{baes_dnn_forward.1} parent=51 // pred_region
            // Predicated region
            $region57: #{baes_dnn_forward.1} parent=55 // pred_check
              _
            $region58: #{baes_dnn_forward.1} parent=55 // pred_check_branch
              %317 = sbr.rel target = $region60
            $region59: #{baes_dnn_forward.1} parent=55 // pred_region
              // Predicated region
              $region72: #{baes_dnn_forward.1} parent=59 // pred_check
                _
              $region73: #{baes_dnn_forward.1} parent=59 // pred_check_branch
                %339 = sbr.rel (0) target = $region75
              $region74: #{baes_dnn_forward.1} parent=59 // pred_region
                loop: start=0, step=1, limit=1
                $region76: #{baes_dnn_forward.1} parent=74 // loop_pre_header
                  _
                $region77: #{baes_dnn_forward.1} parent=74 // loop_header
                  %s341 = sphi 0, %s345
                  %p342 = scmp.ge.s32.totalorder %s341, 1
                  %s346 = sphi %s313, %s313
                  %s347 = sphi %s311, %s311
                $region78: #{baes_dnn_forward.1} parent=74 // loop_header_branch
                  %344 = sbr.rel (%p342) target = $region82
                $region79: #{baes_dnn_forward.1} parent=74 // loop_body
                  _
                $region80: #{baes_dnn_forward.1} parent=74 // loop_footer
                  %s345 = sadd.s32 1, %s341
                $region81: #{baes_dnn_forward.1} parent=74 // loop_footer_branch
                  %340 = sbr.rel target = $region77
                $region82: #{baes_dnn_forward.1} parent=74 // loop_exit
                  _
                %s349 = ssub.s32 16, 1
                loop: start=0, step=1, limit=1
                $region83: #{baes_dnn_forward.1} parent=74 // loop_pre_header
                  _
                $region84: #{baes_dnn_forward.1} parent=74 // loop_header
                  %s351 = sphi 0, %s355
                  %p352 = scmp.ge.s32.totalorder %s351, 1
                  %s356 = sphi %s313, %s313
                  %s357 = sphi %s311, %s311
                $region85: #{baes_dnn_forward.1} parent=74 // loop_header_branch
                  %354 = sbr.rel (%p352) target = $region89
                $region86: #{baes_dnn_forward.1} parent=74 // loop_body
                  %v358 = vld [vmem:[%s356] sm:%s349]
                  %359 = vst [vmem:[%s357] sm:%s349] %v358
                  %v360 = vld [vmem:[%s356 + $0xc] sm:%s349]
                  %361 = vst [vmem:[%s357 + $0x4] sm:%s349] %v360
                  %v362 = vld [vmem:[%s356 + $0x18] sm:%s349]
                  %363 = vst [vmem:[%s357 + $0x8] sm:%s349] %v362
                  %v364 = vld [vmem:[%s356 + $0x24] sm:%s349]
                  %365 = vst [vmem:[%s357 + $0xc] sm:%s349] %v364
                $region87: #{baes_dnn_forward.1} parent=74 // loop_footer
                  %s355 = sadd.s32 1, %s351
                $region88: #{baes_dnn_forward.1} parent=74 // loop_footer_branch
                  %350 = sbr.rel target = $region84
                $region89: #{baes_dnn_forward.1} parent=74 // loop_exit
                  _
              $region75: #{baes_dnn_forward.1} parent=59 // pred_fallthru
                _
            $region60: #{baes_dnn_forward.1} parent=55 // pred_fallthru
              _
            // Predicated region
            $region61: #{baes_dnn_forward.1} parent=55 // pred_check
              _
            $region62: #{baes_dnn_forward.1} parent=55 // pred_check_branch
              %319 = sbr.rel (0) target = $region64
            $region63: #{baes_dnn_forward.1} parent=55 // pred_region
              %s321 = ssub.s32 16, 1
              loop: start=0, step=1, limit=1
              $region65: #{baes_dnn_forward.1} parent=63 // loop_pre_header
                _
              $region66: #{baes_dnn_forward.1} parent=63 // loop_header
                %s323 = sphi 0, %s327
                %p324 = scmp.ge.s32.totalorder %s323, 1
                %s328 = sphi %s313, %s313
                %s329 = sphi %s311, %s311
              $region67: #{baes_dnn_forward.1} parent=63 // loop_header_branch
                %326 = sbr.rel (%p324) target = $region71
              $region68: #{baes_dnn_forward.1} parent=63 // loop_body
                %v330 = vld [vmem:[%s328] sm:%s321]
                %331 = vst [vmem:[%s329] sm:%s321] %v330
                %v332 = vld [vmem:[%s328 + $0xc] sm:%s321]
                %333 = vst [vmem:[%s329 + $0x4] sm:%s321] %v332
                %v334 = vld [vmem:[%s328 + $0x18] sm:%s321]
                %335 = vst [vmem:[%s329 + $0x8] sm:%s321] %v334
                %v336 = vld [vmem:[%s328 + $0x24] sm:%s321]
                %337 = vst [vmem:[%s329 + $0xc] sm:%s321] %v336
              $region69: #{baes_dnn_forward.1} parent=63 // loop_footer
                %s327 = sadd.s32 1, %s323
              $region70: #{baes_dnn_forward.1} parent=63 // loop_footer_branch
                %322 = sbr.rel target = $region66
              $region71: #{baes_dnn_forward.1} parent=63 // loop_exit
                _
            $region64: #{baes_dnn_forward.1} parent=55 // pred_fallthru
              _
          $region56: #{baes_dnn_forward.1} parent=51 // pred_fallthru
            _
          %366 = vnop
        $region52: #{baes_dnn_forward.1} parent=47 // pred_fallthru
          _
        // Predicated region
        $region90: #{baes_dnn_forward.1} parent=47 // pred_check
          %p367 = pneg %p62
        $region91: #{baes_dnn_forward.1} parent=47 // pred_check_branch
          %369 = sbr.rel (%p367) target = $region93
        $region92: #{baes_dnn_forward.1} parent=47 // pred_region
          %p370 = scmp.lt.s32.totalorder %s16, 2
          %s371 = scalar_select %p370, %s16, 2
          %s372 = smul.addr %s371, 8
          %s373 = scalar_lea.vmem %s1, %s372
        $region93: #{baes_dnn_forward.1} parent=47 // pred_fallthru
          _
      $region48: #{baes_dnn_forward.1} parent=5 // pred_fallthru
        _
      %p374 = scmp.le.s32.totalorder 1, %s16
      %p375 = scmp.lt.s32.totalorder %s16, 4
      %p376 = pnand %p374, %p375
      %p377 = pneg %p376
      // Predicated region
      $region94: #{baes_dnn_forward.1} parent=5 // pred_check
        _
      $region95: #{baes_dnn_forward.1} parent=5 // pred_check_branch
        %379 = sbr.rel (%p376) target = $region97
      $region96: #{baes_dnn_forward.1} parent=5 // pred_region
        %s380 = ssub.s32 %s16, 1
        %s381 = sand.u32 %s29, 1
        %s382 = sand.u32 %s29, 1
        %s383 = smul.addr %s382, 16
        %s384 = scalar_lea.vmem [#allocation2], %s383
        // Predicated region
        $region98: #{baes_dnn_forward.1} parent=96 // pred_check
          %p385 = pneg %p42
        $region99: #{baes_dnn_forward.1} parent=96 // pred_check_branch
          %387 = sbr.rel (%p385) target = $region101
        $region100: #{baes_dnn_forward.1} parent=96 // pred_region
          _
        $region101: #{baes_dnn_forward.1} parent=96 // pred_fallthru
          _
        %s388 = sand.u32 %s29, 1
        %s389 = sand.u32 %s29, 1
        %s390 = smul.addr %s389, 16
        %s391 = scalar_lea.vmem [#allocation2], %s390
        %p392 = pneg %p42
        %p393 = pneg %p39
        %p394 = scmp.lt.s32.totalorder %s21, 2
        %s395 = scalar_select %p394, %s21, 2
        %s396 = smul.addr %s395, 8
        %s397 = scalar_lea.vmem %s1, %s396
        %p398 = pneg %p68
        %p399 = pneg %p65
        %p400 = pneg %p89
        %p401 = pneg %p86
        %p402 = pneg %p110
        %p403 = pneg %p107
        %p404 = pneg %p131
        %p405 = pneg %p128
        %p406 = pneg %p152
        %p407 = pneg %p149
        %p408 = pneg %p173
        %p409 = pneg %p170
        %p410 = pneg %p194
        %p411 = pneg %p191
        %p412 = pneg %p215
        %p413 = pneg %p212
        %p414 = pneg %p236
        %p415 = pneg %p233
        %p416 = pneg %p262
        %p417 = pneg %p259
        %p418 = scmp.lt.s32.totalorder %s21, 2
        %s419 = scalar_select %p418, %s21, 2
        %s420 = smul.addr %s419, 2
        %s421 = scalar_lea.vmem %s10, %s420
        %p422 = scmp.lt.s32.totalorder %s21, 2
        %s423 = scalar_select %p422, %s21, 2
        %s424 = smul.addr %s423, 8
        %s425 = scalar_lea.vmem %s1, %s424
        %p426 = scmp.lt.s32.totalorder %s21, 2
        %s427 = scalar_select %p426, %s21, 2
        %s428 = smul.addr %s427, 2
        %s429 = scalar_lea.vmem %s10, %s428
        %v431 = vld [vmem:[%s384] sm:$0xf]
        %v432 = vld [vmem:[%s384 + $0x4] sm:$0xf]
        %v433 = vld [vmem:[%s384 + $0x8] sm:$0xf]
        %v434 = vld [vmem:[%s384 + $0xc] sm:$0xf]
        %v435 = vld [vmem:[%s2] sm:$0xf]
        %v436 = vld [vmem:[%s2 + $0x4] sm:$0xf]
        %v437 = vld [vmem:[%s2 + $0x8] sm:$0xf]
        %v438 = vld [vmem:[%s2 + $0xc] sm:$0xf]
        %v439 = vld [vmem:[%s2 + $0x10] sm:$0xf]
        %v440 = vld [vmem:[%s2 + $0x14] sm:$0xf]
        %v441 = vld [vmem:[%s2 + $0x18] sm:$0xf]
        %v442 = vld [vmem:[%s2 + $0x1c] sm:$0xf]
        %v443 = vld [vmem:[%s2 + $0x20] sm:$0xf]
        %v444 = vld [vmem:[%s2 + $0x24] sm:$0xf]
        %v445 = vld [vmem:[%s2 + $0x28] sm:$0xf]
        %v446 = vld [vmem:[%s2 + $0x2c] sm:$0xf]
        %v447 = vld [vmem:[%s2 + $0x30] sm:$0xf]
        %v448 = vld [vmem:[%s2 + $0x34] sm:$0xf]
        %v449 = vld [vmem:[%s2 + $0x38] sm:$0xf]
        %v450 = vld [vmem:[%s2 + $0x3c] sm:$0xf]
        %v451 = vld [vmem:[%s2 + $0x40] sm:$0xf]
        %v452 = vld [vmem:[%s2 + $0x44] sm:$0xf]
        %v453 = vld [vmem:[%s2 + $0x48] sm:$0xf]
        %v454 = vld [vmem:[%s2 + $0x4c] sm:$0xf]
        %v455 = vld [vmem:[%s2 + $0x50] sm:$0xf]
        %v456 = vld [vmem:[%s2 + $0x54] sm:$0xf]
        %v457 = vld [vmem:[%s2 + $0x58] sm:$0xf]
        %v458 = vld [vmem:[%s2 + $0x5c] sm:$0xf]
        %v459 = vld [vmem:[%s2 + $0x60] sm:$0xf]
        %v460 = vld [vmem:[%s2 + $0x64] sm:$0xf]
        %v461 = vld [vmem:[%s2 + $0x68] sm:$0xf]
        %v462 = vld [vmem:[%s2 + $0x6c] sm:$0xf]
        %v463 = vld [vmem:[%s2 + $0x70] sm:$0xf]
        %v464 = vld [vmem:[%s2 + $0x74] sm:$0xf]
        %v465 = vld [vmem:[%s2 + $0x78] sm:$0xf]
        %v466 = vld [vmem:[%s2 + $0x7c] sm:$0xf]
        %v467 = vld [vmem:[%s3] sm:$0xff]
        %v468 = vld [vmem:[%s3 + $0x8] sm:$0xff]
        %v469 = vld [vmem:[%s3 + $0x10] sm:$0xff]
        %v470 = vld [vmem:[%s3 + $0x18] sm:$0xff]
        %v471 = vld [vmem:[%s3 + $0x20] sm:$0xff]
        %v472 = vld [vmem:[%s3 + $0x28] sm:$0xff]
        %v473 = vld [vmem:[%s3 + $0x30] sm:$0xff]
        %v474 = vld [vmem:[%s3 + $0x38] sm:$0xff]
        %v475 = vld [vmem:[%s3 + $0x40] sm:$0xff]
        %v476 = vld [vmem:[%s3 + $0x48] sm:$0xff]
        %v477 = vld [vmem:[%s3 + $0x50] sm:$0xff]
        %v478 = vld [vmem:[%s3 + $0x58] sm:$0xff]
        %v479 = vld [vmem:[%s3 + $0x60] sm:$0xff]
        %v480 = vld [vmem:[%s3 + $0x68] sm:$0xff]
        %v481 = vld [vmem:[%s3 + $0x70] sm:$0xff]
        %v482 = vld [vmem:[%s3 + $0x78] sm:$0xff]
        %v483 = vld [vmem:[%s3 + $0x80] sm:$0xff]
        %v484 = vld [vmem:[%s3 + $0x88] sm:$0xff]
        %v485 = vld [vmem:[%s3 + $0x90] sm:$0xff]
        %v486 = vld [vmem:[%s3 + $0x98] sm:$0xff]
        %v487 = vld [vmem:[%s3 + $0xa0] sm:$0xff]
        %v488 = vld [vmem:[%s3 + $0xa8] sm:$0xff]
        %v489 = vld [vmem:[%s3 + $0xb0] sm:$0xff]
        %v490 = vld [vmem:[%s3 + $0xb8] sm:$0xff]
        %v491 = vld [vmem:[%s3 + $0xc0] sm:$0xff]
        %v492 = vld [vmem:[%s3 + $0xc8] sm:$0xff]
        %v493 = vld [vmem:[%s3 + $0xd0] sm:$0xff]
        %v494 = vld [vmem:[%s3 + $0xd8] sm:$0xff]
        %v495 = vld [vmem:[%s3 + $0xe0] sm:$0xff]
        %v496 = vld [vmem:[%s3 + $0xe8] sm:$0xff]
        %v497 = vld [vmem:[%s3 + $0xf0] sm:$0xff]
        %v498 = vld [vmem:[%s3 + $0xf8] sm:$0xff]
        %500 = vset.pattern.permute.xlu0 0
        %501 = vperm.xlu0 %500, %v467
        %v502 = vpop.permute.xlu0 %501
        %505 = vset.pattern.permute.xlu0 0
        %506 = vperm.xlu0 %505, %v468
        %v507 = vpop.permute.xlu0 %506
        %510 = vset.pattern.permute.xlu0 0
        %511 = vperm.xlu0 %510, %v469
        %v512 = vpop.permute.xlu0 %511
        %515 = vset.pattern.permute.xlu0 0
        %516 = vperm.xlu0 %515, %v470
        %v517 = vpop.permute.xlu0 %516
        %520 = vset.pattern.permute.xlu0 0
        %521 = vperm.xlu0 %520, %v471
        %v522 = vpop.permute.xlu0 %521
        %525 = vset.pattern.permute.xlu0 0
        %526 = vperm.xlu0 %525, %v472
        %v527 = vpop.permute.xlu0 %526
        %530 = vset.pattern.permute.xlu0 0
        %531 = vperm.xlu0 %530, %v473
        %v532 = vpop.permute.xlu0 %531
        %535 = vset.pattern.permute.xlu0 0
        %536 = vperm.xlu0 %535, %v474
        %v537 = vpop.permute.xlu0 %536
        %540 = vset.pattern.permute.xlu0 0
        %541 = vperm.xlu0 %540, %v475
        %v542 = vpop.permute.xlu0 %541
        %545 = vset.pattern.permute.xlu0 0
        %546 = vperm.xlu0 %545, %v476
        %v547 = vpop.permute.xlu0 %546
        %550 = vset.pattern.permute.xlu0 0
        %551 = vperm.xlu0 %550, %v477
        %v552 = vpop.permute.xlu0 %551
        %555 = vset.pattern.permute.xlu0 0
        %556 = vperm.xlu0 %555, %v478
        %v557 = vpop.permute.xlu0 %556
        %560 = vset.pattern.permute.xlu0 0
        %561 = vperm.xlu0 %560, %v479
        %v562 = vpop.permute.xlu0 %561
        %565 = vset.pattern.permute.xlu0 0
        %566 = vperm.xlu0 %565, %v480
        %v567 = vpop.permute.xlu0 %566
        %570 = vset.pattern.permute.xlu0 0
        %571 = vperm.xlu0 %570, %v481
        %v572 = vpop.permute.xlu0 %571
        %575 = vset.pattern.permute.xlu0 0
        %576 = vperm.xlu0 %575, %v482
        %v577 = vpop.permute.xlu0 %576
        %580 = vset.pattern.permute.xlu0 0
        %581 = vperm.xlu0 %580, %v483
        %v582 = vpop.permute.xlu0 %581
        %585 = vset.pattern.permute.xlu0 0
        %586 = vperm.xlu0 %585, %v484
        %v587 = vpop.permute.xlu0 %586
        %590 = vset.pattern.permute.xlu0 0
        %591 = vperm.xlu0 %590, %v485
        %v592 = vpop.permute.xlu0 %591
        %595 = vset.pattern.permute.xlu0 0
        %596 = vperm.xlu0 %595, %v486
        %v597 = vpop.permute.xlu0 %596
        %600 = vset.pattern.permute.xlu0 0
        %601 = vperm.xlu0 %600, %v487
        %v602 = vpop.permute.xlu0 %601
        %605 = vset.pattern.permute.xlu0 0
        %606 = vperm.xlu0 %605, %v488
        %v607 = vpop.permute.xlu0 %606
        %610 = vset.pattern.permute.xlu0 0
        %611 = vperm.xlu0 %610, %v489
        %v612 = vpop.permute.xlu0 %611
        %615 = vset.pattern.permute.xlu0 0
        %616 = vperm.xlu0 %615, %v490
        %v617 = vpop.permute.xlu0 %616
        %620 = vset.pattern.permute.xlu0 0
        %621 = vperm.xlu0 %620, %v491
        %v622 = vpop.permute.xlu0 %621
        %625 = vset.pattern.permute.xlu0 0
        %626 = vperm.xlu0 %625, %v492
        %v627 = vpop.permute.xlu0 %626
        %630 = vset.pattern.permute.xlu0 0
        %631 = vperm.xlu0 %630, %v493
        %v632 = vpop.permute.xlu0 %631
        %635 = vset.pattern.permute.xlu0 0
        %636 = vperm.xlu0 %635, %v494
        %v637 = vpop.permute.xlu0 %636
        %640 = vset.pattern.permute.xlu0 0
        %641 = vperm.xlu0 %640, %v495
        %v642 = vpop.permute.xlu0 %641
        %645 = vset.pattern.permute.xlu0 0
        %646 = vperm.xlu0 %645, %v496
        %v647 = vpop.permute.xlu0 %646
        %650 = vset.pattern.permute.xlu0 0
        %651 = vperm.xlu0 %650, %v497
        %v652 = vpop.permute.xlu0 %651
        %655 = vset.pattern.permute.xlu0 0
        %656 = vperm.xlu0 %655, %v498
        %v657 = vpop.permute.xlu0 %656
        %v691 = vunpack.c.l.b16 %v435
        %v692 = vunpack.c.l.b16 %v436
        %v693 = vunpack.c.l.b16 %v437
        %v694 = vunpack.c.l.b16 %v438
        %v695 = vunpack.c.l.b16 %v439
        %v696 = vunpack.c.l.b16 %v440
        %v697 = vunpack.c.l.b16 %v441
        %v698 = vunpack.c.l.b16 %v442
        %v699 = vunpack.c.l.b16 %v443
        %v700 = vunpack.c.l.b16 %v444
        %v701 = vunpack.c.l.b16 %v445
        %v702 = vunpack.c.l.b16 %v446
        %v703 = vunpack.c.l.b16 %v447
        %v704 = vunpack.c.l.b16 %v448
        %v705 = vunpack.c.l.b16 %v449
        %v706 = vunpack.c.l.b16 %v450
        %v707 = vunpack.c.l.b16 %v451
        %v708 = vunpack.c.l.b16 %v452
        %v709 = vunpack.c.l.b16 %v453
        %v710 = vunpack.c.l.b16 %v454
        %v711 = vunpack.c.l.b16 %v455
        %v712 = vunpack.c.l.b16 %v456
        %v713 = vunpack.c.l.b16 %v457
        %v714 = vunpack.c.l.b16 %v458
        %v715 = vunpack.c.l.b16 %v459
        %v716 = vunpack.c.l.b16 %v460
        %v717 = vunpack.c.l.b16 %v461
        %v718 = vunpack.c.l.b16 %v462
        %v719 = vunpack.c.l.b16 %v463
        %v720 = vunpack.c.l.b16 %v464
        %v721 = vunpack.c.l.b16 %v465
        %v722 = vunpack.c.l.b16 %v466
        %v723 = vpack.c.b16 %v692, %v691
        %v724 = vpack.c.b16 %v694, %v693
        %v725 = vpack.c.b16 %v696, %v695
        %v726 = vpack.c.b16 %v698, %v697
        %v727 = vpack.c.b16 %v700, %v699
        %v728 = vpack.c.b16 %v702, %v701
        %v729 = vpack.c.b16 %v704, %v703
        %v730 = vpack.c.b16 %v706, %v705
        %v731 = vpack.c.b16 %v708, %v707
        %v732 = vpack.c.b16 %v710, %v709
        %v733 = vpack.c.b16 %v712, %v711
        %v734 = vpack.c.b16 %v714, %v713
        %v735 = vpack.c.b16 %v716, %v715
        %v736 = vpack.c.b16 %v718, %v717
        %v737 = vpack.c.b16 %v720, %v719
        %v738 = vpack.c.b16 %v722, %v721
        %v743 = vunpack.c.l.b16 %v431
        %v744 = vunpack.c.l.b16 %v432
        %v745 = vunpack.c.l.b16 %v433
        %v746 = vunpack.c.l.b16 %v434
        %v747 = vpack.c.b16 %v744, %v743
        %v748 = vpack.c.b16 %v746, %v745
        %vm751 = vcmask 261120
        %v753 = vsel %vm751, %v723, 0
        %v756 = vsel %vm751, %v724, 0
        %v759 = vsel %vm751, %v725, 0
        %v762 = vsel %vm751, %v726, 0
        %v765 = vsel %vm751, %v727, 0
        %v768 = vsel %vm751, %v728, 0
        %v771 = vsel %vm751, %v729, 0
        %v774 = vsel %vm751, %v730, 0
        %v777 = vsel %vm751, %v731, 0
        %v780 = vsel %vm751, %v732, 0
        %v783 = vsel %vm751, %v733, 0
        %v786 = vsel %vm751, %v734, 0
        %v789 = vsel %vm751, %v735, 0
        %v792 = vsel %vm751, %v736, 0
        %v795 = vsel %vm751, %v737, 0
        %v798 = vsel %vm751, %v738, 0
        %800 = vmatpush.bf16.msra.mxu0 0
        %801 = vmatpush.bf16.msra.mxu0 0
        %802 = vmatpush.bf16.msra.mxu0 0
        %803 = vmatpush.bf16.msra.mxu0 0
        %804 = vmatpush.bf16.msra.mxu0 0
        %805 = vmatpush.bf16.msra.mxu0 0
        %806 = vmatpush.bf16.msra.mxu0 %v748
        %807 = vmatpush.bf16.msra.mxu0 %v747
        %808 = vmatmul.bf16.gmra.mxu0 %v753
        %v809 = vpop.f32.mrf.mxu0
        %v810 = vadd.f32 %v502, %v809
        %v811 = vpop.f32.mrf.mxu0
        %v812 = vadd.f32 %v507, %v811
        %813 = vmatmul.bf16.gmra.mxu0 %v756
        %v814 = vpop.f32.mrf.mxu0
        %v815 = vadd.f32 %v512, %v814
        %v816 = vpop.f32.mrf.mxu0
        %v817 = vadd.f32 %v517, %v816
        %818 = vmatmul.bf16.gmra.mxu0 %v759
        %v819 = vpop.f32.mrf.mxu0
        %v820 = vadd.f32 %v522, %v819
        %v821 = vpop.f32.mrf.mxu0
        %v822 = vadd.f32 %v527, %v821
        %823 = vmatmul.bf16.gmra.mxu0 %v762
        %v824 = vpop.f32.mrf.mxu0
        %v825 = vadd.f32 %v532, %v824
        %v826 = vpop.f32.mrf.mxu0
        %v827 = vadd.f32 %v537, %v826
        %828 = vmatmul.bf16.gmra.mxu0 %v765
        %v829 = vpop.f32.mrf.mxu0
        %v830 = vadd.f32 %v542, %v829
        %v831 = vpop.f32.mrf.mxu0
        %v832 = vadd.f32 %v547, %v831
        %833 = vmatmul.bf16.gmra.mxu0 %v768
        %v834 = vpop.f32.mrf.mxu0
        %v835 = vadd.f32 %v552, %v834
        %v836 = vpop.f32.mrf.mxu0
        %v837 = vadd.f32 %v557, %v836
        %838 = vmatmul.bf16.gmra.mxu0 %v771
        %v839 = vpop.f32.mrf.mxu0
        %v840 = vadd.f32 %v562, %v839
        %v841 = vpop.f32.mrf.mxu0
        %v842 = vadd.f32 %v567, %v841
        %843 = vmatmul.bf16.gmra.mxu0 %v774
        %v844 = vpop.f32.mrf.mxu0
        %v845 = vadd.f32 %v572, %v844
        %v846 = vpop.f32.mrf.mxu0
        %v847 = vadd.f32 %v577, %v846
        %848 = vmatmul.bf16.gmra.mxu0 %v777
        %v849 = vpop.f32.mrf.mxu0
        %v850 = vadd.f32 %v582, %v849
        %v851 = vpop.f32.mrf.mxu0
        %v852 = vadd.f32 %v587, %v851
        %853 = vmatmul.bf16.gmra.mxu0 %v780
        %v854 = vpop.f32.mrf.mxu0
        %v855 = vadd.f32 %v592, %v854
        %v856 = vpop.f32.mrf.mxu0
        %v857 = vadd.f32 %v597, %v856
        %858 = vmatmul.bf16.gmra.mxu0 %v783
        %v859 = vpop.f32.mrf.mxu0
        %v860 = vadd.f32 %v602, %v859
        %v861 = vpop.f32.mrf.mxu0
        %v862 = vadd.f32 %v607, %v861
        %863 = vmatmul.bf16.gmra.mxu0 %v786
        %v864 = vpop.f32.mrf.mxu0
        %v865 = vadd.f32 %v612, %v864
        %v866 = vpop.f32.mrf.mxu0
        %v867 = vadd.f32 %v617, %v866
        %868 = vmatmul.bf16.gmra.mxu0 %v789
        %v869 = vpop.f32.mrf.mxu0
        %v870 = vadd.f32 %v622, %v869
        %v871 = vpop.f32.mrf.mxu0
        %v872 = vadd.f32 %v627, %v871
        %873 = vmatmul.bf16.gmra.mxu0 %v792
        %v874 = vpop.f32.mrf.mxu0
        %v875 = vadd.f32 %v632, %v874
        %v876 = vpop.f32.mrf.mxu0
        %v877 = vadd.f32 %v637, %v876
        %878 = vmatmul.bf16.gmra.mxu0 %v795
        %v879 = vpop.f32.mrf.mxu0
        %v880 = vadd.f32 %v642, %v879
        %v881 = vpop.f32.mrf.mxu0
        %v882 = vadd.f32 %v647, %v881
        %883 = vmatmul.bf16.gmra.mxu0 %v798
        %v884 = vpop.f32.mrf.mxu0
        %v885 = vadd.f32 %v652, %v884
        %v886 = vpop.f32.mrf.mxu0
        %v887 = vadd.f32 %v657, %v886
        %888 = vdwg.mxu0
        %v889 = vmax.f32 %v810, 0.0
        %v890 = vmax.f32 %v812, 0.0
        %v891 = vmax.f32 %v815, 0.0
        %v892 = vmax.f32 %v817, 0.0
        %v893 = vmax.f32 %v820, 0.0
        %v894 = vmax.f32 %v822, 0.0
        %v895 = vmax.f32 %v825, 0.0
        %v896 = vmax.f32 %v827, 0.0
        %v897 = vmax.f32 %v830, 0.0
        %v898 = vmax.f32 %v832, 0.0
        %v899 = vmax.f32 %v835, 0.0
        %v900 = vmax.f32 %v837, 0.0
        %v901 = vmax.f32 %v840, 0.0
        %v902 = vmax.f32 %v842, 0.0
        %v903 = vmax.f32 %v845, 0.0
        %v904 = vmax.f32 %v847, 0.0
        %v905 = vmax.f32 %v850, 0.0
        %v906 = vmax.f32 %v852, 0.0
        %v907 = vmax.f32 %v855, 0.0
        %v908 = vmax.f32 %v857, 0.0
        %v909 = vmax.f32 %v860, 0.0
        %v910 = vmax.f32 %v862, 0.0
        %v911 = vmax.f32 %v865, 0.0
        %v912 = vmax.f32 %v867, 0.0
        %v913 = vmax.f32 %v870, 0.0
        %v914 = vmax.f32 %v872, 0.0
        %v915 = vmax.f32 %v875, 0.0
        %v916 = vmax.f32 %v877, 0.0
        %v917 = vmax.f32 %v880, 0.0
        %v918 = vmax.f32 %v882, 0.0
        %v919 = vmax.f32 %v885, 0.0
        %v920 = vmax.f32 %v887, 0.0
        %v921 = vpack.c.bf16 %v890, %v889
        %v922 = vpack.c.bf16 %v892, %v891
        %v923 = vpack.c.bf16 %v894, %v893
        %v924 = vpack.c.bf16 %v896, %v895
        %v925 = vpack.c.bf16 %v898, %v897
        %v926 = vpack.c.bf16 %v900, %v899
        %v927 = vpack.c.bf16 %v902, %v901
        %v928 = vpack.c.bf16 %v904, %v903
        %v929 = vpack.c.bf16 %v906, %v905
        %v930 = vpack.c.bf16 %v908, %v907
        %v931 = vpack.c.bf16 %v910, %v909
        %v932 = vpack.c.bf16 %v912, %v911
        %v933 = vpack.c.bf16 %v914, %v913
        %v934 = vpack.c.bf16 %v916, %v915
        %v935 = vpack.c.bf16 %v918, %v917
        %v936 = vpack.c.bf16 %v920, %v919
        %v937 = vld [vmem:[%s4] sm:$0xff]
        %v938 = vld [vmem:[%s4 + $0x8] sm:$0xff]
        %v939 = vld [vmem:[%s4 + $0x10] sm:$0xff]
        %v940 = vld [vmem:[%s4 + $0x18] sm:$0xff]
        %v941 = vld [vmem:[%s4 + $0x20] sm:$0xff]
        %v942 = vld [vmem:[%s4 + $0x28] sm:$0xff]
        %v943 = vld [vmem:[%s4 + $0x30] sm:$0xff]
        %v944 = vld [vmem:[%s4 + $0x38] sm:$0xff]
        %v945 = vld [vmem:[%s4 + $0x40] sm:$0xff]
        %v946 = vld [vmem:[%s4 + $0x48] sm:$0xff]
        %v947 = vld [vmem:[%s4 + $0x50] sm:$0xff]
        %v948 = vld [vmem:[%s4 + $0x58] sm:$0xff]
        %v949 = vld [vmem:[%s4 + $0x60] sm:$0xff]
        %v950 = vld [vmem:[%s4 + $0x68] sm:$0xff]
        %v951 = vld [vmem:[%s4 + $0x70] sm:$0xff]
        %v952 = vld [vmem:[%s4 + $0x78] sm:$0xff]
        %v953 = vld [vmem:[%s5] sm:$0xff]
        %v954 = vld [vmem:[%s5 + $0x8] sm:$0xff]
        %v955 = vld [vmem:[%s5 + $0x10] sm:$0xff]
        %v956 = vld [vmem:[%s5 + $0x18] sm:$0xff]
        %v957 = vld [vmem:[%s5 + $0x20] sm:$0xff]
        %v958 = vld [vmem:[%s5 + $0x28] sm:$0xff]
        %v959 = vld [vmem:[%s5 + $0x30] sm:$0xff]
        %v960 = vld [vmem:[%s5 + $0x38] sm:$0xff]
        %v961 = vld [vmem:[%s5 + $0x40] sm:$0xff]
        %v962 = vld [vmem:[%s5 + $0x48] sm:$0xff]
        %v963 = vld [vmem:[%s5 + $0x50] sm:$0xff]
        %v964 = vld [vmem:[%s5 + $0x58] sm:$0xff]
        %v965 = vld [vmem:[%s5 + $0x60] sm:$0xff]
        %v966 = vld [vmem:[%s5 + $0x68] sm:$0xff]
        %v967 = vld [vmem:[%s5 + $0x70] sm:$0xff]
        %v968 = vld [vmem:[%s5 + $0x78] sm:$0xff]
        %970 = vset.pattern.permute.xlu0 0
        %971 = vperm.xlu0 %970, %v953
        %v972 = vpop.permute.xlu0 %971
        %975 = vset.pattern.permute.xlu0 0
        %976 = vperm.xlu0 %975, %v954
        %v977 = vpop.permute.xlu0 %976
        %980 = vset.pattern.permute.xlu0 0
        %981 = vperm.xlu0 %980, %v955
        %v982 = vpop.permute.xlu0 %981
        %985 = vset.pattern.permute.xlu0 0
        %986 = vperm.xlu0 %985, %v956
        %v987 = vpop.permute.xlu0 %986
        %990 = vset.pattern.permute.xlu0 0
        %991 = vperm.xlu0 %990, %v957
        %v992 = vpop.permute.xlu0 %991
        %995 = vset.pattern.permute.xlu0 0
        %996 = vperm.xlu0 %995, %v958
        %v997 = vpop.permute.xlu0 %996
        %1000 = vset.pattern.permute.xlu0 0
        %1001 = vperm.xlu0 %1000, %v959
        %v1002 = vpop.permute.xlu0 %1001
        %1005 = vset.pattern.permute.xlu0 0
        %1006 = vperm.xlu0 %1005, %v960
        %v1007 = vpop.permute.xlu0 %1006
        %1010 = vset.pattern.permute.xlu0 0
        %1011 = vperm.xlu0 %1010, %v961
        %v1012 = vpop.permute.xlu0 %1011
        %1015 = vset.pattern.permute.xlu0 0
        %1016 = vperm.xlu0 %1015, %v962
        %v1017 = vpop.permute.xlu0 %1016
        %1020 = vset.pattern.permute.xlu0 0
        %1021 = vperm.xlu0 %1020, %v963
        %v1022 = vpop.permute.xlu0 %1021
        %1025 = vset.pattern.permute.xlu0 0
        %1026 = vperm.xlu0 %1025, %v964
        %v1027 = vpop.permute.xlu0 %1026
        %1030 = vset.pattern.permute.xlu0 0
        %1031 = vperm.xlu0 %1030, %v965
        %v1032 = vpop.permute.xlu0 %1031
        %1035 = vset.pattern.permute.xlu0 0
        %1036 = vperm.xlu0 %1035, %v966
        %v1037 = vpop.permute.xlu0 %1036
        %1040 = vset.pattern.permute.xlu0 0
        %1041 = vperm.xlu0 %1040, %v967
        %v1042 = vpop.permute.xlu0 %1041
        %1045 = vset.pattern.permute.xlu0 0
        %1046 = vperm.xlu0 %1045, %v968
        %v1047 = vpop.permute.xlu0 %1046
        %v1065 = vunpack.c.l.b16 %v937
        %v1066 = vunpack.c.h.b16 %v937
        %v1067 = vunpack.c.l.b16 %v938
        %v1068 = vunpack.c.h.b16 %v938
        %v1069 = vunpack.c.l.b16 %v939
        %v1070 = vunpack.c.h.b16 %v939
        %v1071 = vunpack.c.l.b16 %v940
        %v1072 = vunpack.c.h.b16 %v940
        %v1073 = vunpack.c.l.b16 %v941
        %v1074 = vunpack.c.h.b16 %v941
        %v1075 = vunpack.c.l.b16 %v942
        %v1076 = vunpack.c.h.b16 %v942
        %v1077 = vunpack.c.l.b16 %v943
        %v1078 = vunpack.c.h.b16 %v943
        %v1079 = vunpack.c.l.b16 %v944
        %v1080 = vunpack.c.h.b16 %v944
        %v1081 = vunpack.c.l.b16 %v945
        %v1082 = vunpack.c.h.b16 %v945
        %v1083 = vunpack.c.l.b16 %v946
        %v1084 = vunpack.c.h.b16 %v946
        %v1085 = vunpack.c.l.b16 %v947
        %v1086 = vunpack.c.h.b16 %v947
        %v1087 = vunpack.c.l.b16 %v948
        %v1088 = vunpack.c.h.b16 %v948
        %v1089 = vunpack.c.l.b16 %v949
        %v1090 = vunpack.c.h.b16 %v949
        %v1091 = vunpack.c.l.b16 %v950
        %v1092 = vunpack.c.h.b16 %v950
        %v1093 = vunpack.c.l.b16 %v951
        %v1094 = vunpack.c.h.b16 %v951
        %v1095 = vunpack.c.l.b16 %v952
        %v1096 = vunpack.c.h.b16 %v952
        %v1097 = vpack.c.b16 %v1067, %v1065
        %v1098 = vpack.c.b16 %v1068, %v1066
        %v1099 = vpack.c.b16 %v1071, %v1069
        %v1100 = vpack.c.b16 %v1072, %v1070
        %v1101 = vpack.c.b16 %v1075, %v1073
        %v1102 = vpack.c.b16 %v1076, %v1074
        %v1103 = vpack.c.b16 %v1079, %v1077
        %v1104 = vpack.c.b16 %v1080, %v1078
        %v1105 = vpack.c.b16 %v1083, %v1081
        %v1106 = vpack.c.b16 %v1084, %v1082
        %v1107 = vpack.c.b16 %v1087, %v1085
        %v1108 = vpack.c.b16 %v1088, %v1086
        %v1109 = vpack.c.b16 %v1091, %v1089
        %v1110 = vpack.c.b16 %v1092, %v1090
        %v1111 = vpack.c.b16 %v1095, %v1093
        %v1112 = vpack.c.b16 %v1096, %v1094
        %1129 = vmatpush.bf16.msra.mxu0 %v928
        %1130 = vmatpush.bf16.msra.mxu0 %v927
        %1131 = vmatpush.bf16.msra.mxu0 %v926
        %1132 = vmatpush.bf16.msra.mxu0 %v925
        %1133 = vmatpush.bf16.msra.mxu0 %v924
        %1134 = vmatpush.bf16.msra.mxu0 %v923
        %1135 = vmatpush.bf16.msra.mxu0 %v922
        %1136 = vmatpush.bf16.msra.mxu0 %v921
        %1137 = vmatmul.bf16.gmra.mxu0 %v1097
        %v1138 = vpop.f32.mrf.mxu0
        %v1139 = vadd.f32 %v972, %v1138
        %v1140 = vpop.f32.mrf.mxu0
        %v1141 = vadd.f32 %v977, %v1140
        %1142 = vmatmul.bf16.gmra.mxu0 %v1099
        %v1143 = vpop.f32.mrf.mxu0
        %v1144 = vadd.f32 %v982, %v1143
        %v1145 = vpop.f32.mrf.mxu0
        %v1146 = vadd.f32 %v987, %v1145
        %1147 = vmatmul.bf16.gmra.mxu0 %v1101
        %v1148 = vpop.f32.mrf.mxu0
        %v1149 = vadd.f32 %v992, %v1148
        %v1150 = vpop.f32.mrf.mxu0
        %v1151 = vadd.f32 %v997, %v1150
        %1152 = vmatmul.bf16.gmra.mxu0 %v1103
        %v1153 = vpop.f32.mrf.mxu0
        %v1154 = vadd.f32 %v1002, %v1153
        %v1155 = vpop.f32.mrf.mxu0
        %v1156 = vadd.f32 %v1007, %v1155
        %1157 = vmatmul.bf16.gmra.mxu0 %v1105
        %v1158 = vpop.f32.mrf.mxu0
        %v1159 = vadd.f32 %v1012, %v1158
        %v1160 = vpop.f32.mrf.mxu0
        %v1161 = vadd.f32 %v1017, %v1160
        %1162 = vmatmul.bf16.gmra.mxu0 %v1107
        %v1163 = vpop.f32.mrf.mxu0
        %v1164 = vadd.f32 %v1022, %v1163
        %v1165 = vpop.f32.mrf.mxu0
        %v1166 = vadd.f32 %v1027, %v1165
        %1167 = vmatmul.bf16.gmra.mxu0 %v1109
        %v1168 = vpop.f32.mrf.mxu0
        %v1169 = vadd.f32 %v1032, %v1168
        %v1170 = vpop.f32.mrf.mxu0
        %v1171 = vadd.f32 %v1037, %v1170
        %1172 = vmatmul.bf16.gmra.mxu0 %v1111
        %v1173 = vpop.f32.mrf.mxu0
        %v1174 = vadd.f32 %v1042, %v1173
        %v1175 = vpop.f32.mrf.mxu0
        %v1176 = vadd.f32 %v1047, %v1175
        %1177 = vdwg.mxu0
        %1178 = vmatpush.bf16.msra.mxu0 %v936
        %1179 = vmatpush.bf16.msra.mxu0 %v935
        %1180 = vmatpush.bf16.msra.mxu0 %v934
        %1181 = vmatpush.bf16.msra.mxu0 %v933
        %1182 = vmatpush.bf16.msra.mxu0 %v932
        %1183 = vmatpush.bf16.msra.mxu0 %v931
        %1184 = vmatpush.bf16.msra.mxu0 %v930
        %1185 = vmatpush.bf16.msra.mxu0 %v929
        %1186 = vmatmul.bf16.gmra.mxu0 %v1098
        %v1187 = vpop.f32.mrf.mxu0
        %v1188 = vadd.f32 %v1139, %v1187
        %v1189 = vpop.f32.mrf.mxu0
        %v1190 = vadd.f32 %v1141, %v1189
        %1191 = vmatmul.bf16.gmra.mxu0 %v1100
        %v1192 = vpop.f32.mrf.mxu0
        %v1193 = vadd.f32 %v1144, %v1192
        %v1194 = vpop.f32.mrf.mxu0
        %v1195 = vadd.f32 %v1146, %v1194
        %1196 = vmatmul.bf16.gmra.mxu0 %v1102
        %v1197 = vpop.f32.mrf.mxu0
        %v1198 = vadd.f32 %v1149, %v1197
        %v1199 = vpop.f32.mrf.mxu0
        %v1200 = vadd.f32 %v1151, %v1199
        %1201 = vmatmul.bf16.gmra.mxu0 %v1104
        %v1202 = vpop.f32.mrf.mxu0
        %v1203 = vadd.f32 %v1154, %v1202
        %v1204 = vpop.f32.mrf.mxu0
        %v1205 = vadd.f32 %v1156, %v1204
        %1206 = vmatmul.bf16.gmra.mxu0 %v1106
        %v1207 = vpop.f32.mrf.mxu0
        %v1208 = vadd.f32 %v1159, %v1207
        %v1209 = vpop.f32.mrf.mxu0
        %v1210 = vadd.f32 %v1161, %v1209
        %1211 = vmatmul.bf16.gmra.mxu0 %v1108
        %v1212 = vpop.f32.mrf.mxu0
        %v1213 = vadd.f32 %v1164, %v1212
        %v1214 = vpop.f32.mrf.mxu0
        %v1215 = vadd.f32 %v1166, %v1214
        %1216 = vmatmul.bf16.gmra.mxu0 %v1110
        %v1217 = vpop.f32.mrf.mxu0
        %v1218 = vadd.f32 %v1169, %v1217
        %v1219 = vpop.f32.mrf.mxu0
        %v1220 = vadd.f32 %v1171, %v1219
        %1221 = vmatmul.bf16.gmra.mxu0 %v1112
        %v1222 = vpop.f32.mrf.mxu0
        %v1223 = vadd.f32 %v1174, %v1222
        %v1224 = vpop.f32.mrf.mxu0
        %v1225 = vadd.f32 %v1176, %v1224
        %1226 = vdwg.mxu0
        %v1227 = vmax.f32 %v1188, 0.0
        %v1228 = vmax.f32 %v1190, 0.0
        %v1229 = vmax.f32 %v1193, 0.0
        %v1230 = vmax.f32 %v1195, 0.0
        %v1231 = vmax.f32 %v1198, 0.0
        %v1232 = vmax.f32 %v1200, 0.0
        %v1233 = vmax.f32 %v1203, 0.0
        %v1234 = vmax.f32 %v1205, 0.0
        %v1235 = vmax.f32 %v1208, 0.0
        %v1236 = vmax.f32 %v1210, 0.0
        %v1237 = vmax.f32 %v1213, 0.0
        %v1238 = vmax.f32 %v1215, 0.0
        %v1239 = vmax.f32 %v1218, 0.0
        %v1240 = vmax.f32 %v1220, 0.0
        %v1241 = vmax.f32 %v1223, 0.0
        %v1242 = vmax.f32 %v1225, 0.0
        %v1243 = vpack.c.bf16 %v1228, %v1227
        %v1244 = vpack.c.bf16 %v1230, %v1229
        %v1245 = vpack.c.bf16 %v1232, %v1231
        %v1246 = vpack.c.bf16 %v1234, %v1233
        %v1247 = vpack.c.bf16 %v1236, %v1235
        %v1248 = vpack.c.bf16 %v1238, %v1237
        %v1249 = vpack.c.bf16 %v1240, %v1239
        %v1250 = vpack.c.bf16 %v1242, %v1241
        %v1251 = vld [vmem:[%s6] sm:$0xf]
        %v1252 = vld [vmem:[%s6 + $0x4] sm:$0xf]
        %v1253 = vld [vmem:[%s6 + $0x8] sm:$0xf]
        %v1254 = vld [vmem:[%s6 + $0xc] sm:$0xf]
        %v1255 = vld [vmem:[%s6 + $0x10] sm:$0xf]
        %v1256 = vld [vmem:[%s6 + $0x14] sm:$0xf]
        %v1257 = vld [vmem:[%s6 + $0x18] sm:$0xf]
        %v1258 = vld [vmem:[%s6 + $0x1c] sm:$0xf]
        %v1259 = vld [vmem:[%s7] sm:$0xff]
        %v1260 = vld [vmem:[%s7 + $0x8] sm:$0xff]
        %v1261 = vld [vmem:[%s7 + $0x10] sm:$0xff]
        %v1262 = vld [vmem:[%s7 + $0x18] sm:$0xff]
        %v1263 = vld [vmem:[%s7 + $0x20] sm:$0xff]
        %v1264 = vld [vmem:[%s7 + $0x28] sm:$0xff]
        %v1265 = vld [vmem:[%s7 + $0x30] sm:$0xff]
        %v1266 = vld [vmem:[%s7 + $0x38] sm:$0xff]
        %1268 = vset.pattern.permute.xlu0 0
        %1269 = vperm.xlu0 %1268, %v1259
        %v1270 = vpop.permute.xlu0 %1269
        %1273 = vset.pattern.permute.xlu0 0
        %1274 = vperm.xlu0 %1273, %v1260
        %v1275 = vpop.permute.xlu0 %1274
        %1278 = vset.pattern.permute.xlu0 0
        %1279 = vperm.xlu0 %1278, %v1261
        %v1280 = vpop.permute.xlu0 %1279
        %1283 = vset.pattern.permute.xlu0 0
        %1284 = vperm.xlu0 %1283, %v1262
        %v1285 = vpop.permute.xlu0 %1284
        %1288 = vset.pattern.permute.xlu0 0
        %1289 = vperm.xlu0 %1288, %v1263
        %v1290 = vpop.permute.xlu0 %1289
        %1293 = vset.pattern.permute.xlu0 0
        %1294 = vperm.xlu0 %1293, %v1264
        %v1295 = vpop.permute.xlu0 %1294
        %1298 = vset.pattern.permute.xlu0 0
        %1299 = vperm.xlu0 %1298, %v1265
        %v1300 = vpop.permute.xlu0 %1299
        %1303 = vset.pattern.permute.xlu0 0
        %1304 = vperm.xlu0 %1303, %v1266
        %v1305 = vpop.permute.xlu0 %1304
        %v1315 = vunpack.c.l.b16 %v1251
        %v1316 = vunpack.c.l.b16 %v1252
        %v1317 = vunpack.c.l.b16 %v1253
        %v1318 = vunpack.c.l.b16 %v1254
        %v1319 = vunpack.c.l.b16 %v1255
        %v1320 = vunpack.c.l.b16 %v1256
        %v1321 = vunpack.c.l.b16 %v1257
        %v1322 = vunpack.c.l.b16 %v1258
        %v1323 = vpack.c.b16 %v1316, %v1315
        %v1324 = vpack.c.b16 %v1318, %v1317
        %v1325 = vpack.c.b16 %v1320, %v1319
        %v1326 = vpack.c.b16 %v1322, %v1321
        %1331 = vmatpush.bf16.msra.mxu0 %v1250
        %1332 = vmatpush.bf16.msra.mxu0 %v1249
        %1333 = vmatpush.bf16.msra.mxu0 %v1248
        %1334 = vmatpush.bf16.msra.mxu0 %v1247
        %1335 = vmatpush.bf16.msra.mxu0 %v1246
        %1336 = vmatpush.bf16.msra.mxu0 %v1245
        %1337 = vmatpush.bf16.msra.mxu0 %v1244
        %1338 = vmatpush.bf16.msra.mxu0 %v1243
        %1339 = vmatmul.bf16.gmra.mxu0 %v1323
        %v1340 = vpop.f32.mrf.mxu0
        %v1341 = vadd.f32 %v1270, %v1340
        %v1342 = vpop.f32.mrf.mxu0
        %v1343 = vadd.f32 %v1275, %v1342
        %1344 = vmatmul.bf16.gmra.mxu0 %v1324
        %v1345 = vpop.f32.mrf.mxu0
        %v1346 = vadd.f32 %v1280, %v1345
        %v1347 = vpop.f32.mrf.mxu0
        %v1348 = vadd.f32 %v1285, %v1347
        %1349 = vmatmul.bf16.gmra.mxu0 %v1325
        %v1350 = vpop.f32.mrf.mxu0
        %v1351 = vadd.f32 %v1290, %v1350
        %v1352 = vpop.f32.mrf.mxu0
        %v1353 = vadd.f32 %v1295, %v1352
        %1354 = vmatmul.bf16.gmra.mxu0 %v1326
        %v1355 = vpop.f32.mrf.mxu0
        %v1356 = vadd.f32 %v1300, %v1355
        %v1357 = vpop.f32.mrf.mxu0
        %v1358 = vadd.f32 %v1305, %v1357
        %1359 = vdwg.mxu0
        %v1360 = vmax.f32 %v1341, 0.0
        %v1361 = vmax.f32 %v1343, 0.0
        %v1362 = vmax.f32 %v1346, 0.0
        %v1363 = vmax.f32 %v1348, 0.0
        %v1364 = vmax.f32 %v1351, 0.0
        %v1365 = vmax.f32 %v1353, 0.0
        %v1366 = vmax.f32 %v1356, 0.0
        %v1367 = vmax.f32 %v1358, 0.0
        %v1368 = vpack.c.bf16 %v1361, %v1360
        %v1369 = vpack.c.bf16 %v1363, %v1362
        %v1370 = vpack.c.bf16 %v1365, %v1364
        %v1371 = vpack.c.bf16 %v1367, %v1366
        %v1372 = vld [vmem:[%s8] sm:$0xf]
        %v1373 = vld [vmem:[%s9] sm:$0xff]
        %1375 = vset.pattern.permute.xlu0 0
        %1376 = vperm.xlu0 %1375, %v1373
        %v1377 = vpop.permute.xlu0 %1376
        %vm1379 = vcmask 523264
        %v1381 = vsel %vm1379, %v1372, 0
        %1383 = vmatpush.bf16.msra.mxu0 0
        %1384 = vmatpush.bf16.msra.mxu0 0
        %1385 = vmatpush.bf16.msra.mxu0 0
        %1386 = vmatpush.bf16.msra.mxu0 0
        %1387 = vmatpush.bf16.msra.mxu0 %v1371
        %1388 = vmatpush.bf16.msra.mxu0 %v1370
        %1389 = vmatpush.bf16.msra.mxu0 %v1369
        %1390 = vmatpush.bf16.msra.mxu0 %v1368
        %1391 = vmatmul.bf16.gmra.mxu0 %v1381
        %v1392 = vpop.f32.mrf.mxu0
        %v1393 = vadd.f32 %v1377, %v1392
        %v1394 = vpop.f32.mrf.mxu0
        %1395 = vdwg.mxu0
        %v1396 = vld [vmem:[%s425] sm:$0xf]
        %vm1397 = vcmask 1043456
        %v1398 = vsel %vm1397, %v1393, -inf
        %v1399 = vrot.slane %v1398, 4
        %v1400 = vmax.f32 %v1398, %v1399
        %v1401 = vrot.slane %v1400, 2
        %v1402 = vmax.f32 %v1400, %v1401
        %v1403 = vrot.slane %v1402, 1
        %v1404 = vmax.f32 %v1402, %v1403
        %v1405 = vsub.f32 %v1393, %v1404
        %v1406 = vmul.f32 %v1405, 1.442695
        %v1407 = vpow.pop %v1406
        %v1408 = vmul.f32 %v1407, %v1396
        %v1409 = vsel %vm1397, %v1408, 0.0
        %v1410 = vrot.slane %v1409, 4
        %v1411 = vadd.f32 %v1409, %v1410
        %v1412 = vrot.slane %v1411, 2
        %v1413 = vadd.f32 %v1411, %v1412
        %v1414 = vrot.slane %v1413, 1
        %v1415 = vadd.f32 %v1413, %v1414
        %v1416 = vsel %vm1397, %v1407, 0.0
        %v1417 = vrot.slane %v1416, 4
        %v1418 = vadd.f32 %v1416, %v1417
        %v1419 = vrot.slane %v1418, 2
        %v1420 = vadd.f32 %v1418, %v1419
        %v1421 = vrot.slane %v1420, 1
        %v1422 = vadd.f32 %v1420, %v1421
        %v1423 = vrcp.pop %v1422
        %v1424 = vmul.f32 %v1415, %v1423
        %v1425 = vld [vmem:[%s425 + $0x4] sm:$0xf]
        %vm1426 = vcmask 1047556
        %v1427 = vsel %vm1426, %v1393, -inf
        %v1428 = vrot.slane %v1427, 4
        %v1429 = vmax.f32 %v1427, %v1428
        %v1430 = vrot.slane %v1429, 2
        %v1431 = vmax.f32 %v1429, %v1430
        %v1432 = vrot.slane %v1431, 1
        %v1433 = vmax.f32 %v1431, %v1432
        %v1434 = vsub.f32 %v1393, %v1433
        %v1435 = vmul.f32 %v1434, 1.442695
        %v1436 = vpow.pop %v1435
        %v1438 = vrot.slane %v1425, 4
        %v1440 = vmul.f32 %v1436, %v1438
        %v1442 = vrot.slane %v1440, 4
        %v1444 = vsel %vm1397, %v1442, 0.0
        %v1445 = vrot.slane %v1444, 4
        %v1446 = vadd.f32 %v1444, %v1445
        %v1447 = vrot.slane %v1446, 2
        %v1448 = vadd.f32 %v1446, %v1447
        %v1449 = vrot.slane %v1448, 1
        %v1450 = vadd.f32 %v1448, %v1449
        %v1452 = vrot.slane %v1436, 4
        %v1454 = vsel %vm1397, %v1452, 0.0
        %v1455 = vrot.slane %v1454, 4
        %v1456 = vadd.f32 %v1454, %v1455
        %v1457 = vrot.slane %v1456, 2
        %v1458 = vadd.f32 %v1456, %v1457
        %v1459 = vrot.slane %v1458, 1
        %v1460 = vadd.f32 %v1458, %v1459
        %v1461 = vrcp.pop %v1460
        %v1462 = vmul.f32 %v1450, %v1461
        %vm1463 = vcmask 1040384
        %v1464 = vsel %vm1463, %v1424, %v1462
        %1465 = vst [vmem:[%s429] sm:$0x3] %v1464
        %p1466 = scmp.lt.s32.totalorder %s21, 2
        %s1467 = scalar_select %p1466, %s21, 2
        %s1468 = smul.addr %s1467, 2
        %s1469 = scalar_lea.vmem %s10, %s1468
        // Predicated region
        $region102: #{baes_dnn_forward.1} parent=96 // pred_check
          %p1470 = pneg %p259
        $region103: #{baes_dnn_forward.1} parent=96 // pred_check_branch
          %1472 = sbr.rel (%p1470) target = $region105
        $region104: #{baes_dnn_forward.1} parent=96 // pred_region
          _
        $region105: #{baes_dnn_forward.1} parent=96 // pred_fallthru
          _
      $region97: #{baes_dnn_forward.1} parent=5 // pred_fallthru
        _
      %p1473 = scmp.le.s32.totalorder 2, %s16
      // Predicated region
      $region106: #{baes_dnn_forward.1} parent=5 // pred_check
        %p1474 = pneg %p1473
      $region107: #{baes_dnn_forward.1} parent=5 // pred_check_branch
        %1476 = sbr.rel (%p1474) target = $region109
      $region108: #{baes_dnn_forward.1} parent=5 // pred_region
        %s1477 = ssub.s32 %s16, 2
        // Predicated region
        $region110: #{baes_dnn_forward.1} parent=108 // pred_check
          %p1478 = pneg %p265
        $region111: #{baes_dnn_forward.1} parent=108 // pred_check_branch
          %1480 = sbr.rel (%p1478) target = $region113
        $region112: #{baes_dnn_forward.1} parent=108 // pred_region
          %p1481 = scmp.lt.s32.totalorder %s22, 2
          %s1482 = scalar_select %p1481, %s22, 2
          %s1483 = smul.addr %s1482, 2
          %s1484 = scalar_lea.vmem %s10, %s1483
        $region113: #{baes_dnn_forward.1} parent=108 // pred_fallthru
          _
      $region109: #{baes_dnn_forward.1} parent=5 // pred_fallthru
        _
    $region6: #{baes_dnn_forward.1} parent=1 // loop_footer
      %s20 = sadd.s32 1, %s16
    $region7: #{baes_dnn_forward.1} parent=1 // loop_footer_branch
      %15 = sbr.rel target = $region3
    $region8: #{baes_dnn_forward.1} parent=1 // loop_exit
      _

</llo_original>
